<compile_context>
chip_gen: v5e
topology: v5e:2x2
jax: 0.10.0
libtpu: 0.0.40
codegen_flags: <defaults>
</compile_context>

<pallas_src>
import functools

import jax
import jax.numpy as jnp
from jax.experimental import pallas as pl
from jax.experimental.pallas import tpu as pltpu


def _round_up(x, m):
    return (x + m - 1) // m * m


@functools.lru_cache(maxsize=None)
def _vmem_limit_bytes():
    """~75% of physical VMEM, capped at 100 MiB (96 MiB v5e/v6e, 48 MiB v7x)."""
    cap = 64 * 1024 * 1024
    try:
        info = pltpu.get_tpu_info()
        cap = int(getattr(info, "vmem_capacity_bytes", cap) or cap)
    except Exception:
        pass
    return int(min(cap * 3 // 4, 100 * 1024 * 1024))


def _compiler_params(dimension_semantics):
    return pltpu.CompilerParams(dimension_semantics=dimension_semantics,
                                vmem_limit_bytes=_vmem_limit_bytes())


def _spec(shape, index_map, *, buffers=None):
    """BlockSpec helper; buffers=1 single-buffers grid-constant operands."""
    if buffers is not None and hasattr(pl, "Buffered"):
        try:
            return pl.BlockSpec(shape, index_map,
                                pipeline_mode=pl.Buffered(buffers))
        except TypeError:  # older BlockSpec without pipeline_mode
            pass
    return pl.BlockSpec(shape, index_map)


def _pick_row_tile(h, w, pool, target_pixels=1024):
    """Smallest row tile dividing H with th*W >= target; whole image if none."""
    for t in range(1, h + 1):
        if h % t:
            continue
        if pool and t % 2:
            continue
        if t * w >= target_pixels:
            return t
    return h


# ---------------------------------------------------------------------------
# Pallas kernels
# ---------------------------------------------------------------------------

def _conv3x3_bn_relu_kernel(x_ref, w_ref, scale_ref, bias_ref, o_ref, *,
                            th, cin, kpk, pool):
    # x_ref:     (1, H, W, Cp)    full (spatially unpadded) image, VMEM resident
    # w_ref:     (kpk, Cout_pad)  9 taps packed along K at stride cin (real)
    # scale_ref: (1, Cout_pad)    folded BN scale (f32)
    # bias_ref:  (1, Cout_pad)    folded conv-bias + BN shift (f32)
    # o_ref:     (1, th, W, Cout) or (1, th//2, W//2, Cout) when pool is fused
    hb = pl.program_id(1)
    n_hb = pl.num_programs(1)
    _, H, W, Cp = x_ref.shape
    Cout = o_ref.shape[-1]

    row0 = hb * th
    if th % 8 == 0:
        row0 = pl.multiple_of(row0, 8)

    # 1-row halo built in VMEM (no HBM pre-padding pass): clamp + zero-mask.
    mid = x_ref[0, pl.ds(row0, th), :, :]                       # (th, W, Cp)
    top = x_ref[0, pl.ds(jnp.maximum(row0 - 1, 0), 1), :, :]    # (1, W, Cp)
    bot = x_ref[0, pl.ds(jnp.minimum(row0 + th, H - 1), 1), :, :]
    top = jnp.where(hb == 0, jnp.zeros_like(top), top)
    bot = jnp.where(hb == n_hb - 1, jnp.zeros_like(bot), bot)
    slab = jnp.concatenate([top, mid, bot], axis=0)             # (th+2, W, Cp)
    zcol = jnp.zeros((th + 2, 1, Cp), slab.dtype)
    slab = jnp.concatenate([zcol, slab, zcol], axis=1)          # (th+2, W+2, Cp)

    # im2col with the 9 taps packed at stride `cin` (real channels) along K and
    # zero-padded only up to kpk = round_up(9*cin, 128): one MXU matmul per
    # tile, no per-channel padding waste, no f32 accumulator round trips.
    taps = [slab[dy:dy + th, dx:dx + W, :cin]
            for dy in range(3) for dx in range(3)]
    if kpk > 9 * cin:
        taps.append(jnp.zeros((th, W, kpk - 9 * cin), slab.dtype))
    patch = jnp.concatenate(taps, axis=-1).reshape(th * W, kpk)

    acc = jnp.dot(patch, w_ref[...], preferred_element_type=jnp.float32)

    # Fused BN (eval) + ReLU epilogue in f32.
    y = jnp.maximum(acc * scale_ref[...] + bias_ref[...], 0.0)
    y = y.reshape(th, W, Cout)

    if pool:                                                    # fused 2x2 max pool
        y = y.reshape(th // 2, 2, W // 2, 2, Cout)
        y = jnp.max(y, axis=3)
        y = jnp.max(y, axis=1)

    o_ref[...] = y[None].astype(o_ref.dtype)


def _maxpool2x2_kernel(x_ref, o_ref):
    # Standalone pool (only used when a pool does not directly follow a conv).
    _, H, W, C = x_ref.shape
    x = x_ref[0].reshape(H // 2, 2, W // 2, 2, C)
    o_ref[...] = jnp.max(jnp.max(x, axis=3), axis=1)[None]


def _global_avgpool_kernel(x_ref, o_ref):
    # AdaptiveAvgPool2d((1,1)) + flatten, per batch element (tiny feature map).
    x = x_ref[0].astype(jnp.float32)
    o_ref[...] = jnp.mean(x, axis=(0, 1), keepdims=True).astype(o_ref.dtype)


def _linear_kernel(x_ref, w_ref, b_ref, o_ref, *, relu):
    y = jnp.dot(x_ref[...], w_ref[...],
                preferred_element_type=jnp.float32) + b_ref[...]
    if relu:
        y = jnp.maximum(y, 0.0)
    o_ref[...] = y.astype(o_ref.dtype)


def _linear_ktiled_kernel(x_ref, w_ref, b_ref, o_ref, acc_ref, *, relu):
    # Fallback for very large K; acc persists across the K axis.
    k = pl.program_id(1)

    @pl.when(k == 0)
    def _init():
        acc_ref[...] = jnp.zeros_like(acc_ref)

    acc_ref[...] += jnp.dot(x_ref[...], w_ref[...],
                            preferred_element_type=jnp.float32)

    @pl.when(k == pl.num_programs(1) - 1)
    def _finish():
        y = acc_ref[...] + b_ref[...]
        if relu:
            y = jnp.maximum(y, 0.0)
        o_ref[...] = y.astype(o_ref.dtype)


# ---------------------------------------------------------------------------
# Wrappers (tiling, BlockSpecs, grids)
# ---------------------------------------------------------------------------

def conv3x3_bn_relu(x, w_packed, scale, bias, *, cin, pool):
    # x: (N, H, W, Cp) bf16 with real channels in [0, cin) and zeros above.
    N, H, W, Cp = x.shape
    kpk, cout_pad = w_packed.shape
    assert kpk == _round_up(9 * cin, 128)
    if pool:
        assert H % 2 == 0 and W % 2 == 0, "2x2 pool needs even spatial dims"

    th = _pick_row_tile(H, W, pool)
    n_hb = H // th
    tho, wo = (th // 2, W // 2) if pool else (th, W)

    scale2 = scale.reshape(1, cout_pad).astype(jnp.float32)
    bias2 = bias.reshape(1, cout_pad).astype(jnp.float32)
    kernel = functools.partial(_conv3x3_bn_relu_kernel,
                               th=th, cin=cin, kpk=kpk, pool=pool)

    return pl.pallas_call(
        kernel,
        out_shape=jax.ShapeDtypeStruct((N, n_hb * tho, wo, cout_pad),
                                       jnp.bfloat16),
        grid_spec=pltpu.PrefetchScalarGridSpec(
            num_scalar_prefetch=0,
            grid=(N, n_hb),
            in_specs=[
                # Full image per batch element; block index constant along the
                # row axis (DMA'd once per image).  Single-buffered together
                # with the grid-constant weights / scale / bias to stay inside
                # v7x's 64 MiB VMEM at real VGG shapes.
                _spec((1, H, W, Cp), lambda n, h: (n, 0, 0, 0), buffers=1),
                _spec((kpk, cout_pad), lambda n, h: (0, 0), buffers=1),
                _spec((1, cout_pad), lambda n, h: (0, 0), buffers=1),
                _spec((1, cout_pad), lambda n, h: (0, 0), buffers=1),
            ],
            out_specs=pl.BlockSpec((1, tho, wo, cout_pad),
                                   lambda n, h: (n, h, 0, 0)),
        ),
        compiler_params=_compiler_params(("parallel", "arbitrary")),
    )(x, w_packed, scale2, bias2)


def maxpool2x2(x):
    # Rarely taken in VGG (pools always follow a conv and get fused there).
    N, H, W, C = x.shape
    assert H % 2 == 0 and W % 2 == 0, "odd spatial dims unsupported"
    return pl.pallas_call(
        _maxpool2x2_kernel,
        out_shape=jax.ShapeDtypeStruct((N, H // 2, W // 2, C), x.dtype),
        grid_spec=pltpu.PrefetchScalarGridSpec(
            num_scalar_prefetch=0,
            grid=(N,),
            in_specs=[pl.BlockSpec((1, H, W, C), lambda n: (n, 0, 0, 0))],
            out_specs=pl.BlockSpec((1, H // 2, W // 2, C),
                                   lambda n: (n, 0, 0, 0)),
        ),
        compiler_params=_compiler_params(("parallel",)),
    )(x)


def global_avgpool(x):
    N, H, W, C = x.shape
    out = pl.pallas_call(
        _global_avgpool_kernel,
        out_shape=jax.ShapeDtypeStruct((N, 1, C), jnp.bfloat16),
        grid_spec=pltpu.PrefetchScalarGridSpec(
            num_scalar_prefetch=0,
            grid=(N,),
            in_specs=[pl.BlockSpec((1, H, W, C), lambda n: (n, 0, 0, 0))],
            out_specs=pl.BlockSpec((1, 1, C), lambda n: (n, 0, 0)),
        ),
        compiler_params=_compiler_params(("parallel",)),
    )(x)
    return out.reshape(N, C)


_FC_TILE_BYTES = 8 * 1024 * 1024  # bf16 weight tile; two buffers fit v7x VMEM


def linear(x, w, b, *, relu, out_dtype=jnp.bfloat16):
    # x: (M, K) with M = batch (tiny); w: (K, Nout) bf16; b: (Nout,) f32.
    # FC layers are pure HBM weight streaming: few, large grid steps
    # (tk = full K, tn up to ~_FC_TILE_BYTES of weights per step).
    x = x.astype(jnp.bfloat16)
    w = w.astype(jnp.bfloat16)
    M, K = x.shape
    Nout = w.shape[1]
    b2 = b.reshape(1, Nout).astype(jnp.float32)

    tn = 128
    for cand in (4096, 2048, 1024, 512, 256, 128):
        if cand <= Nout and Nout % cand == 0 and K * cand * 2 <= _FC_TILE_BYTES:
            tn = cand
            break

    # TODO(synk): quantize FC weights (int8 on v5e/v6e, fp8 on v7x) with
    # per-channel scales folded into this epilogue to halve weight HBM traffic.
    if K * tn * 2 <= _FC_TILE_BYTES or K % 512 != 0:
        # Single pass over K (the common case): no scratch, no init/finish.
        kernel = functools.partial(_linear_kernel, relu=relu)
        w_buffers = 1 if Nout // tn == 1 else None  # grid-constant -> 1 buffer
        return pl.pallas_call(
            kernel,
            out_shape=jax.ShapeDtypeStruct((M, Nout), out_dtype),
            grid_spec=pltpu.PrefetchScalarGridSpec(
                num_scalar_prefetch=0,
                grid=(Nout // tn,),
                in_specs=[
                    _spec((M, K), lambda j: (0, 0), buffers=1),
                    _spec((K, tn), lambda j: (0, j), buffers=w_buffers),
                    pl.BlockSpec((1, tn), lambda j: (0, j)),
                ],
                out_specs=pl.BlockSpec((M, tn), lambda j: (0, j)),
            ),
            compiler_params=_compiler_params(("parallel",)),
        )(x, w, b2)

    # Huge-K fallback (e.g. a 512*7*7 -> 4096 head): stream K as well.
    tk = 2048
    while K % tk:
        tk //= 2
    kernel = functools.partial(_linear_ktiled_kernel, relu=relu)
    return pl.pallas_call(
        kernel,
        out_shape=jax.ShapeDtypeStruct((M, Nout), out_dtype),
        grid_spec=pltpu.PrefetchScalarGridSpec(
            num_scalar_prefetch=0,
            grid=(Nout // tn, K // tk),
            in_specs=[pl.BlockSpec((M, tk), lambda j, k: (0, k)),
                      pl.BlockSpec((tk, tn), lambda j, k: (k, j)),
                      pl.BlockSpec((1, tn), lambda j, k: (0, j))],
            out_specs=pl.BlockSpec((M, tn), lambda j, k: (0, j)),
            scratch_shapes=[pltpu.VMEM((M, tn), jnp.float32)],
        ),
        compiler_params=_compiler_params(("parallel", "arbitrary")),
    )(x, w, b2)


# ---------------------------------------------------------------------------
# Parameters: raw init (mirrors the PyTorch module) + packing for the kernels
# ---------------------------------------------------------------------------

def init_params(key, layer_spec, num_classes):
    """Raw f32 parameters in PyTorch layouts (Conv (O,I,3,3), Linear (O,I))."""
    convs = []
    in_c = 3
    for l in layer_spec:
        if l == 'pool':
            continue
        key, kw = jax.random.split(key)
        std = (2.0 / (l * 9)) ** 0.5          # kaiming_normal_, fan_out, relu
        w = jax.random.normal(kw, (l, in_c, 3, 3), jnp.float32) * std
        convs.append(dict(
            w=w,
            b=jnp.zeros((l,), jnp.float32),
            gamma=jnp.ones((l,), jnp.float32),
            beta=jnp.zeros((l,), jnp.float32),
            rmean=jnp.zeros((l,), jnp.float32),
            rvar=jnp.ones((l,), jnp.float32),
        ))
        in_c = l

    dims = [in_c, 4096, 4096, num_classes]    # classifier: 512->4096->4096->nc
    linears = []
    for i in range(3):
        key, kw = jax.random.split(key)
        w = jax.random.normal(kw, (dims[i + 1], dims[i]), jnp.float32) * 0.01
        linears.append((w, jnp.zeros((dims[i + 1],), jnp.float32)))
    return convs, linears


def prepare_params(params, layer_spec, num_classes, eps=1e-5):
    """Fold BN into scale/bias; pack the 9 conv taps along K at stride Cin
    (real channels), padding K only to a multiple of 128; pad Cout to 128."""
    convs, linears = params
    packed_convs = []
    in_c = 3
    ci = 0
    for l in layer_spec:
        if l == 'pool':
            continue
        p = convs[ci]
        ci += 1
        cout = l
        cout_pad = _round_up(cout, 128)
        kpk = _round_up(9 * in_c, 128)
        scale = p['gamma'] / jnp.sqrt(p['rvar'] + eps)
        bias = (p['b'] - p['rmean']) * scale + p['beta']
        scale_pad = jnp.zeros((cout_pad,), jnp.float32).at[:cout].set(scale)
        bias_pad = jnp.zeros((cout_pad,), jnp.float32).at[:cout].set(bias)
        wt = jnp.transpose(p['w'], (2, 3, 1, 0))          # (kh, kw, I, O)
        wp = jnp.zeros((kpk, cout_pad), jnp.float32)
        for dy in range(3):
            for dx in range(3):
                off = (3 * dy + dx) * in_c
                wp = wp.at[off:off + in_c, :cout].set(wt[dy, dx])
        packed_convs.append(dict(w=wp.astype(jnp.bfloat16),
                                 scale=scale_pad, bias=bias_pad))
        in_c = cout

    packed_linears = []
    nc_pad = _round_up(num_classes, 128)
    for i, (w, b) in enumerate(linears):
        out_dim, in_dim = w.shape
        out_pad = nc_pad if i == 2 else out_dim
        wp = jnp.zeros((in_dim, out_pad), jnp.float32).at[:, :out_dim].set(w.T)
        bp = jnp.zeros((out_pad,), jnp.float32).at[:out_dim].set(b)
        packed_linears.append((wp.astype(jnp.bfloat16), bp))
    return packed_convs, packed_linears


# ---------------------------------------------------------------------------
# Forward pass
# ---------------------------------------------------------------------------

def vgg_forward(x_nchw, packed_params, layer_spec, num_classes):
    packed_convs, packed_linears = packed_params
    _, C, _, _ = x_nchw.shape
    c_pad = _round_up(C, 128)
    x = jnp.transpose(x_nchw, (0, 2, 3, 1)).astype(jnp.bfloat16)  # NCHW->NHWC
    x = jnp.pad(x, ((0, 0), (0, 0), (0, 0), (0, c_pad - C)))      # lane pad once

    in_c = C
    ci = 0
    i = 0
    n_items = len(layer_spec)
    while i < n_items:
        l = layer_spec[i]
        if l == 'pool':
            x = maxpool2x2(x)            # pool not preceded by a conv
            i += 1
        else:
            p = packed_convs[ci]
            ci += 1
            fuse_pool = (i + 1 < n_items) and (layer_spec[i + 1] == 'pool')
            x = conv3x3_bn_relu(x, p['w'], p['scale'], p['bias'],
                                cin=in_c, pool=fuse_pool)
            in_c = l
            i += 2 if fuse_pool else 1

    x = global_avgpool(x)                # (N, 512) bf16

    (w1, b1), (w2, b2), (w3, b3) = packed_linears
    x = linear(x, w1, b1, relu=True)
    # TODO(synk): nn.Dropout is train-mode RNG; eval-mode forward => identity.
    x = linear(x, w2, b2, relu=True)
    x = linear(x, w3, b3, relu=False, out_dtype=jnp.float32)
    return x[:, :num_classes]            # drop the lane padding of the logits


# ---------------------------------------------------------------------------
# Main
# ---------------------------------------------------------------------------

if __name__ == "__main__":
    key = jax.random.PRNGKey(0)
    key, kparams, kx = jax.random.split(key, 3)

    # Small VGG-style spec; the last conv must have 512 channels to match the
    # module's hard-coded Linear(512 * 1 * 1, 4096) classifier head.
    layer_spec = (16, 'pool', 32, 'pool', 512)
    num_classes = 10

    raw_params = init_params(kparams, layer_spec, num_classes)
    packed_params = prepare_params(raw_params, layer_spec, num_classes)

    x = jax.random.normal(kx, (2, 3, 16, 16), jnp.float32)   # NCHW like torch

    # --- correctness check of the conv kernel (layer 1 with fused pool) -----
    convs0 = raw_params[0][0]
    p0 = packed_params[0][0]
    eps = 1e-5
    xh = jnp.transpose(x, (0, 2, 3, 1)).astype(jnp.bfloat16)
    xh = jnp.pad(xh, ((0, 0), (0, 0), (0, 0), (0, 128 - 3)))
    got = conv3x3_bn_relu(xh, p0['w'], p0['scale'], p0['bias'],
                          cin=3, pool=True)[..., :layer_spec[0]]
    ref = jax.lax.conv_general_dilated(
        x.astype(jnp.bfloat16).astype(jnp.float32),
        convs0['w'].astype(jnp.bfloat16).astype(jnp.float32),
        (1, 1), 'SAME', dimension_numbers=('NCHW', 'OIHW', 'NCHW'))
    s0 = convs0['gamma'] / jnp.sqrt(convs0['rvar'] + eps)
    b0 = (convs0['b'] - convs0['rmean']) * s0 + convs0['beta']
    ref = jnp.maximum(ref * s0[None, :, None, None] + b0[None, :, None, None],
                      0.0)
    ref = ref.reshape(2, layer_spec[0], 8, 2, 8, 2).max(axis=(3, 5))
    ref = jnp.transpose(ref, (0, 2, 3, 1))
    assert bool(jnp.allclose(got.astype(jnp.float32), ref,
                             atol=3e-2, rtol=3e-2)), \
        float(jnp.max(jnp.abs(got.astype(jnp.float32) - ref)))

    # --- full forward --------------------------------------------------------
    fwd = jax.jit(vgg_forward, static_argnums=(2, 3))
    out = fwd(x, packed_params, layer_spec, num_classes)
    out = jax.block_until_ready(out)

    assert out.shape == (2, num_classes), out.shape
    assert bool(jnp.all(jnp.isfinite(out)))
    print("KERNEL_OK")
</pallas_src>

<mosaic_0001>
module attributes {stable_mosaic.version = 11 : i64} {
  func.func @_conv3x3_bn_relu_kernel(%arg0: i32, %arg1: i32, %arg2: memref<1x16x16x128xbf16, #tpu.memory_space<vmem>>, %arg3: memref<128x128xbf16, #tpu.memory_space<vmem>>, %arg4: memref<1x128xf32, #tpu.memory_space<vmem>>, %arg5: memref<1x128xf32, #tpu.memory_space<vmem>>, %arg6: memref<1x8x8x128xbf16, #tpu.memory_space<vmem>>) attributes {dimension_semantics = [#tpu.dimension_semantics<parallel>, #tpu.dimension_semantics<arbitrary>], iteration_bounds = array<i64: 2, 1>, scalar_prefetch = 0 : i64, scratch_operands = 0 : i64, tpu.core_type = #tpu.core_type<tc>, window_params = [{pipeline_mode = #tpu.pipeline_mode<synchronous>, transform_indices = @transform_0, window_bounds = array<i64: 1, 16, 16, 128>}, {pipeline_mode = #tpu.pipeline_mode<synchronous>, transform_indices = @transform_1, window_bounds = array<i64: 128, 128>}, {pipeline_mode = #tpu.pipeline_mode<synchronous>, transform_indices = @transform_2, window_bounds = array<i64: 1, 128>}, {pipeline_mode = #tpu.pipeline_mode<synchronous>, transform_indices = @transform_3, window_bounds = array<i64: 1, 128>}, {transform_indices = @transform_4, window_bounds = array<i64: 1, 8, 8, 128>}]} {
    %c16_i32 = arith.constant 16 : i32
    %0 = arith.muli %arg1, %c16_i32 : i32
    %1 = tpu.assume_multiple %0, 8 : i32
    %c0 = arith.constant 0 : index
    %2 = arith.index_cast %1 : i32 to index
    %c0_0 = arith.constant 0 : index
    %c0_1 = arith.constant 0 : index
    %3 = vector.load %arg2[%c0, %2, %c0_0, %c0_1] : memref<1x16x16x128xbf16, #tpu.memory_space<vmem>>, vector<1x16x16x128xbf16>
    %4 = vector.shape_cast %3 : vector<1x16x16x128xbf16> to vector<16x16x128xbf16>
    %c1_i32 = arith.constant 1 : i32
    %5 = arith.subi %1, %c1_i32 : i32
    %c0_i32 = arith.constant 0 : i32
    %6 = arith.maxsi %5, %c0_i32 : i32
    %c0_2 = arith.constant 0 : index
    %7 = arith.index_cast %6 : i32 to index
    %c0_3 = arith.constant 0 : index
    %c0_4 = arith.constant 0 : index
    %8 = vector.load %arg2[%c0_2, %7, %c0_3, %c0_4] : memref<1x16x16x128xbf16, #tpu.memory_space<vmem>>, vector<1x1x16x128xbf16>
    %9 = vector.shape_cast %8 : vector<1x1x16x128xbf16> to vector<1x16x128xbf16>
    %c16_i32_5 = arith.constant 16 : i32
    %10 = arith.addi %1, %c16_i32_5 : i32
    %c15_i32 = arith.constant 15 : i32
    %11 = arith.minsi %10, %c15_i32 : i32
    %c0_6 = arith.constant 0 : index
    %12 = arith.index_cast %11 : i32 to index
    %c0_7 = arith.constant 0 : index
    %c0_8 = arith.constant 0 : index
    %13 = vector.load %arg2[%c0_6, %12, %c0_7, %c0_8] : memref<1x16x16x128xbf16, #tpu.memory_space<vmem>>, vector<1x1x16x128xbf16>
    %14 = vector.shape_cast %13 : vector<1x1x16x128xbf16> to vector<1x16x128xbf16>
    %c0_i32_9 = arith.constant 0 : i32
    %15 = arith.cmpi eq, %arg1, %c0_i32_9 : i32
    %cst = arith.constant 0.000000e+00 : bf16
    %16 = vector.broadcast %cst : bf16 to vector<1x16x128xbf16>
    %17 = arith.select %15, %16, %9 : vector<1x16x128xbf16>
    %c0_i32_10 = arith.constant 0 : i32
    %18 = arith.cmpi eq, %arg1, %c0_i32_10 : i32
    %cst_11 = arith.constant 0.000000e+00 : bf16
    %19 = vector.broadcast %cst_11 : bf16 to vector<1x16x128xbf16>
    %20 = arith.select %18, %19, %14 : vector<1x16x128xbf16>
    %21 = tpu.concatenate %17, %4, %20 in 0 : vector<1x16x128xbf16>, vector<16x16x128xbf16>, vector<1x16x128xbf16> -> vector<18x16x128xbf16>
    %cst_12 = arith.constant 0.000000e+00 : bf16
    %22 = vector.broadcast %cst_12 : bf16 to vector<18x1x128xbf16>
    %23 = tpu.concatenate %22, %21, %22 in 1 : vector<18x1x128xbf16>, vector<18x16x128xbf16>, vector<18x1x128xbf16> -> vector<18x18x128xbf16>
    %24 = vector.extract_strided_slice %23 {offsets = [0, 0, 0], sizes = [16, 16, 3], strides = [1, 1, 1]} : vector<18x18x128xbf16> to vector<16x16x3xbf16>
    %25 = vector.extract_strided_slice %23 {offsets = [0, 1, 0], sizes = [16, 16, 3], strides = [1, 1, 1]} : vector<18x18x128xbf16> to vector<16x16x3xbf16>
    %26 = vector.extract_strided_slice %23 {offsets = [0, 2, 0], sizes = [16, 16, 3], strides = [1, 1, 1]} : vector<18x18x128xbf16> to vector<16x16x3xbf16>
    %27 = vector.extract_strided_slice %23 {offsets = [1, 0, 0], sizes = [16, 16, 3], strides = [1, 1, 1]} : vector<18x18x128xbf16> to vector<16x16x3xbf16>
    %28 = vector.extract_strided_slice %23 {offsets = [1, 1, 0], sizes = [16, 16, 3], strides = [1, 1, 1]} : vector<18x18x128xbf16> to vector<16x16x3xbf16>
    %29 = vector.extract_strided_slice %23 {offsets = [1, 2, 0], sizes = [16, 16, 3], strides = [1, 1, 1]} : vector<18x18x128xbf16> to vector<16x16x3xbf16>
    %30 = vector.extract_strided_slice %23 {offsets = [2, 0, 0], sizes = [16, 16, 3], strides = [1, 1, 1]} : vector<18x18x128xbf16> to vector<16x16x3xbf16>
    %31 = vector.extract_strided_slice %23 {offsets = [2, 1, 0], sizes = [16, 16, 3], strides = [1, 1, 1]} : vector<18x18x128xbf16> to vector<16x16x3xbf16>
    %32 = vector.extract_strided_slice %23 {offsets = [2, 2, 0], sizes = [16, 16, 3], strides = [1, 1, 1]} : vector<18x18x128xbf16> to vector<16x16x3xbf16>
    %cst_13 = arith.constant 0.000000e+00 : bf16
    %33 = vector.broadcast %cst_13 : bf16 to vector<16x16x101xbf16>
    %34 = tpu.concatenate %24, %25, %26, %27, %28, %29, %30, %31, %32, %33 in 2 : vector<16x16x3xbf16>, vector<16x16x3xbf16>, vector<16x16x3xbf16>, vector<16x16x3xbf16>, vector<16x16x3xbf16>, vector<16x16x3xbf16>, vector<16x16x3xbf16>, vector<16x16x3xbf16>, vector<16x16x3xbf16>, vector<16x16x101xbf16> -> vector<16x16x128xbf16>
    %35 = vector.shape_cast %34 : vector<16x16x128xbf16> to vector<256x128xbf16>
    %c0_14 = arith.constant 0 : index
    %c0_15 = arith.constant 0 : index
    %36 = vector.load %arg3[%c0_14, %c0_15] : memref<128x128xbf16, #tpu.memory_space<vmem>>, vector<128x128xbf16>
    %cst_16 = arith.constant dense<0.000000e+00> : vector<256x128xf32>
    %37 = tpu.matmul %35, %36, %cst_16 {dimension_numbers = #tpu.dot_dimension_numbers<[1], [0], [0], [1], [0, 0, 1, 1], [], []>} : vector<256x128xbf16>, vector<128x128xbf16>, vector<256x128xf32> -> vector<256x128xf32>
    %c0_17 = arith.constant 0 : index
    %c0_18 = arith.constant 0 : index
    %38 = vector.load %arg4[%c0_17, %c0_18] : memref<1x128xf32, #tpu.memory_space<vmem>>, vector<1x128xf32>
    %39 = vector.broadcast %38 : vector<1x128xf32> to vector<256x128xf32>
    %40 = arith.mulf %37, %39 : vector<256x128xf32>
    %c0_19 = arith.constant 0 : index
    %c0_20 = arith.constant 0 : index
    %41 = vector.load %arg5[%c0_19, %c0_20] : memref<1x128xf32, #tpu.memory_space<vmem>>, vector<1x128xf32>
    %42 = vector.broadcast %41 : vector<1x128xf32> to vector<256x128xf32>
    %43 = arith.addf %40, %42 : vector<256x128xf32>
    %cst_21 = arith.constant 0.000000e+00 : f32
    %44 = vector.broadcast %cst_21 : f32 to vector<256x128xf32>
    %45 = arith.maximumf %43, %44 : vector<256x128xf32>
    %46 = vector.shape_cast %45 : vector<256x128xf32> to vector<16x16x128xf32>
    %47 = vector.shape_cast %46 : vector<16x16x128xf32> to vector<8x2x8x2x128xf32>
    %cst_22 = arith.constant dense<0xFF800000> : vector<8x2x8x128xf32>
    %48 = vector.multi_reduction <maximumf>, %47, %cst_22 [3] : vector<8x2x8x2x128xf32> to vector<8x2x8x128xf32>
    %cst_23 = arith.constant dense<0xFF800000> : vector<8x8x128xf32>
    %49 = vector.multi_reduction <maximumf>, %48, %cst_23 [1] : vector<8x2x8x128xf32> to vector<8x8x128xf32>
    %50 = vector.shape_cast %49 : vector<8x8x128xf32> to vector<1x8x8x128xf32>
    %51 = arith.truncf %50 : vector<1x8x8x128xf32> to vector<1x8x8x128xbf16>
    %c0_24 = arith.constant 0 : index
    %c0_25 = arith.constant 0 : index
    %c0_26 = arith.constant 0 : index
    %c0_27 = arith.constant 0 : index
    %52 = vector.load %arg6[%c0_24, %c0_25, %c0_26, %c0_27] : memref<1x8x8x128xbf16, #tpu.memory_space<vmem>>, vector<1x8x8x128xbf16>
    tpu.vector_store %arg6[%c0_24, %c0_25, %c0_26, %c0_27], %51 {strides = array<i32>} : memref<1x8x8x128xbf16, #tpu.memory_space<vmem>>, vector<1x8x8x128xbf16>,
    return
  }
  func.func @transform_0(%arg0: i32, %arg1: i32) -> (i32, i32, i32, i32) {
    %c0_i32 = arith.constant 0 : i32
    %c0_i32_0 = arith.constant 0 : i32
    %c0_i32_1 = arith.constant 0 : i32
    %c0_i32_2 = arith.constant 0 : i32
    return %arg0, %c0_i32, %c0_i32_0, %c0_i32_1 : i32, i32, i32, i32
  }
  func.func @transform_1(%arg0: i32, %arg1: i32) -> (i32, i32) {
    %c0_i32 = arith.constant 0 : i32
    %c0_i32_0 = arith.constant 0 : i32
    %c0_i32_1 = arith.constant 0 : i32
    return %c0_i32, %c0_i32_0 : i32, i32
  }
  func.func @transform_2(%arg0: i32, %arg1: i32) -> (i32, i32) {
    %c0_i32 = arith.constant 0 : i32
    %c0_i32_0 = arith.constant 0 : i32
    %c0_i32_1 = arith.constant 0 : i32
    return %c0_i32, %c0_i32_0 : i32, i32
  }
  func.func @transform_3(%arg0: i32, %arg1: i32) -> (i32, i32) {
    %c0_i32 = arith.constant 0 : i32
    %c0_i32_0 = arith.constant 0 : i32
    %c0_i32_1 = arith.constant 0 : i32
    return %c0_i32, %c0_i32_0 : i32, i32
  }
  func.func @transform_4(%arg0: i32, %arg1: i32) -> (i32, i32, i32, i32) {
    %c0_i32 = arith.constant 0 : i32
    %c0_i32_0 = arith.constant 0 : i32
    %c0_i32_1 = arith.constant 0 : i32
    return %arg0, %arg1, %c0_i32, %c0_i32_0 : i32, i32, i32, i32
  }
}

</mosaic_0001>

<llo_original>
// kernel: tpu_custom_call.1
$region0: #{tpu_custom_call.1}
  #allocation0 [shape = 'u32[]', space=smem, size = 0x4, offset = 0x4, fixed_abs, tag = 'smem constant byte address 0x4 - core index']
  #allocation1 [shape = 'u32[72,128]{1,0:T(1,128)}', space=vmem, size = 0x9000, scoped, tag = 'internal scratch']
  %s0 = inlined_call_operand.hbm [shape: bf16[2,16,16,128], index: 0, kind: input, shape index: {}]
  %s1 = inlined_call_operand.hbm [shape: bf16[128,128], index: 1, kind: input, shape index: {}]
  %s2 = inlined_call_operand.vmem [shape: f32[1,128], index: 2, kind: input, shape index: {}]
  %s3 = inlined_call_operand.vmem [shape: f32[1,128], index: 3, kind: input, shape index: {}]
  %s4 = inlined_call_operand.hbm [shape: bf16[2,8,8,128], index: 4, kind: output, shape index: {}]
  %s5 = sld [smem:[#allocation0]]
  $region57: #{tpu_custom_call.1} parent=0
    _
  %s7 = ssub.s32 1, %s5
  %s8 = scalar_select 0, %s7, %s5
  $region1: #{tpu_custom_call.1} parent=0
    #allocation2 [shape = 'u8[65536]{0}', space=vmem, size = 0x10000, scoped, tag = 'input window, operand 0, single buffered']
    #allocation3 [shape = 's32[2]{0}', space=sflag, size = 0x8, scoped, tag = 'scoped memory for tpu_custom_call.1']
    #allocation4 [shape = 's32[2]{0}', space=sflag, size = 0x8, scoped, tag = 'scoped memory for tpu_custom_call.1']
    #allocation5 [shape = 'u8[32768]{0}', space=vmem, size = 0x8000, scoped, tag = 'input window, operand 1, single buffered']
    #allocation6 [shape = 's32[1]{0}', space=sflag, size = 0x4, scoped, tag = 'scoped memory for tpu_custom_call.1']
    #allocation7 [shape = 'u8[32768]{0}', space=vmem, size = 0x8000, scoped, tag = 'output window, operand 0']
    %9 = vsyncpa [#allocation3], 0
    %10 = vsyncpa [#allocation6], 0
    %11 = vsyncpa [#allocation4], 0
    %s12 = scalar_lea.sflag [#allocation4], 1
    %13 = vsyncpa %s12, 0
    loop: start=0, step=1, limit=4
    $region2: #{tpu_custom_call.1} parent=1 // loop_pre_header
      _
    $region3: #{tpu_custom_call.1} parent=1 // loop_header
      %s15 = sphi 0, %s19
      %p16 = scmp.ge.s32.totalorder %s15, 4
      %s22 = sphi 0, %s34
      %s23 = sphi 0, %s30
      %s24 = sphi 0, %s22
      %s25 = sphi 0, %s23
      %s26 = sphi 0, %s24
      %s27 = sphi 0, %s25
      %s37 = sphi 0, %s39
      %s40 = sphi 0, %s37
      %s41 = sphi 0, %s40
      %s57 = sphi 0, %s41
      %s61 = sphi 0, %s61
      %s63 = sphi 0, %s61
      %s64 = sphi 0, %s63
      %s78 = sphi 0, %s64
      %s82 = sphi 0, %s82
      %s84 = sphi 0, %s82
      %s85 = sphi 0, %s84
      %s99 = sphi 0, %s85
      %s103 = sphi 0, %s103
      %s105 = sphi 0, %s103
      %s106 = sphi 0, %s105
      %s120 = sphi 0, %s106
      %s128 = sphi 0, %s130
      %s131 = sphi 0, %s128
      %s132 = sphi 0, %s131
      %s148 = sphi 0, %s132
    $region4: #{tpu_custom_call.1} parent=1 // loop_header_branch
      %18 = sbr.rel (%p16) target = $region8
    $region5: #{tpu_custom_call.1} parent=1 // loop_body
      %s20 = ssub.s32 %s15, 1
      %s21 = ssub.s32 %s15, 2
      %s28 = sadd.s32 1, %s23
      %p29 = scmp.ge.s32.totalorder %s28, 1
      %s30 = scalar_select %p29, 0, %s28
      %s31 = sadd.s32 1, %s22
      %s32 = scalar_select %p29, %s31, %s22
      %p33 = scmp.ge.s32.totalorder %s32, 2
      %s34 = scalar_select %p33, 0, %s32
      %s35 = ssub.s32 %s22, %s34
      %p36 = scmp.eq.s32.totalorder %s35, 0
      %s38 = sadd.s32 %s37, 1
      %s39 = scalar_select %p36, %s37, %s38
      %p42 = pneg %p36
      %p43 = scmp.eq.s32.totalorder %s15, 1
      %p44 = por %p42, %p43
      %p45 = scmp.ne.s32.totalorder %s37, %s40
      %p46 = scmp.eq.s32.totalorder %s15, 0
      %p47 = por %p45, %p46
      %p48 = scmp.ne.s32.totalorder %s37, %s40
      %p49 = scmp.eq.s32.totalorder %s20, 1
      %p50 = por %p48, %p49
      %p51 = scmp.ne.s32.totalorder %s40, %s41
      %p52 = scmp.eq.s32.totalorder %s20, 0
      %p53 = por %p51, %p52
      %p54 = scmp.ne.s32.totalorder %s40, %s41
      %p55 = scmp.eq.s32.totalorder %s21, 1
      %p56 = por %p54, %p55
      %p58 = scmp.ne.s32.totalorder %s41, %s57
      %p59 = scmp.eq.s32.totalorder %s21, 0
      %p60 = por %p58, %p59
      %s62 = sadd.s32 %s61, 1
      %p65 = scmp.eq.s32.totalorder %s15, 1
      %p66 = scmp.ne.s32.totalorder %s61, %s63
      %p67 = scmp.eq.s32.totalorder %s15, 0
      %p68 = por %p66, %p67
      %p69 = scmp.ne.s32.totalorder %s61, %s63
      %p70 = scmp.eq.s32.totalorder %s20, 1
      %p71 = por %p69, %p70
      %p72 = scmp.ne.s32.totalorder %s63, %s64
      %p73 = scmp.eq.s32.totalorder %s20, 0
      %p74 = por %p72, %p73
      %p75 = scmp.ne.s32.totalorder %s63, %s64
      %p76 = scmp.eq.s32.totalorder %s21, 1
      %p77 = por %p75, %p76
      %p79 = scmp.ne.s32.totalorder %s64, %s78
      %p80 = scmp.eq.s32.totalorder %s21, 0
      %p81 = por %p79, %p80
      %s83 = sadd.s32 %s82, 1
      %p86 = scmp.eq.s32.totalorder %s15, 1
      %p87 = scmp.ne.s32.totalorder %s82, %s84
      %p88 = scmp.eq.s32.totalorder %s15, 0
      %p89 = por %p87, %p88
      %p90 = scmp.ne.s32.totalorder %s82, %s84
      %p91 = scmp.eq.s32.totalorder %s20, 1
      %p92 = por %p90, %p91
      %p93 = scmp.ne.s32.totalorder %s84, %s85
      %p94 = scmp.eq.s32.totalorder %s20, 0
      %p95 = por %p93, %p94
      %p96 = scmp.ne.s32.totalorder %s84, %s85
      %p97 = scmp.eq.s32.totalorder %s21, 1
      %p98 = por %p96, %p97
      %p100 = scmp.ne.s32.totalorder %s85, %s99
      %p101 = scmp.eq.s32.totalorder %s21, 0
      %p102 = por %p100, %p101
      %s104 = sadd.s32 %s103, 1
      %p107 = scmp.eq.s32.totalorder %s15, 1
      %p108 = scmp.ne.s32.totalorder %s103, %s105
      %p109 = scmp.eq.s32.totalorder %s15, 0
      %p110 = por %p108, %p109
      %p111 = scmp.ne.s32.totalorder %s103, %s105
      %p112 = scmp.eq.s32.totalorder %s20, 1
      %p113 = por %p111, %p112
      %p114 = scmp.ne.s32.totalorder %s105, %s106
      %p115 = scmp.eq.s32.totalorder %s20, 0
      %p116 = por %p114, %p115
      %p117 = scmp.ne.s32.totalorder %s105, %s106
      %p118 = scmp.eq.s32.totalorder %s21, 1
      %p119 = por %p117, %p118
      %p121 = scmp.ne.s32.totalorder %s106, %s120
      %p122 = scmp.eq.s32.totalorder %s21, 0
      %p123 = por %p121, %p122
      %s124 = ssub.s32 %s22, %s34
      %s125 = ssub.s32 %s23, %s30
      %s126 = sor.u32 %s124, %s125
      %p127 = scmp.eq.s32.totalorder %s126, 0
      %s129 = sadd.s32 %s128, 1
      %s130 = scalar_select %p127, %s128, %s129
      %p133 = pneg %p127
      %p134 = scmp.eq.s32.totalorder %s15, 1
      %p135 = por %p133, %p134
      %p136 = scmp.ne.s32.totalorder %s128, %s131
      %p137 = scmp.eq.s32.totalorder %s15, 0
      %p138 = por %p136, %p137
      %p139 = scmp.ne.s32.totalorder %s128, %s131
      %p140 = scmp.eq.s32.totalorder %s20, 1
      %p141 = por %p139, %p140
      %p142 = scmp.ne.s32.totalorder %s131, %s132
      %p143 = scmp.eq.s32.totalorder %s20, 0
      %p144 = por %p142, %p143
      %p145 = scmp.ne.s32.totalorder %s131, %s132
      %p146 = scmp.eq.s32.totalorder %s21, 1
      %p147 = por %p145, %p146
      %p149 = scmp.ne.s32.totalorder %s132, %s148
      %p150 = scmp.eq.s32.totalorder %s21, 0
      %p151 = por %p149, %p150
      %p152 = scmp.le.s32.totalorder 1, %s15
      %p153 = scmp.lt.s32.totalorder %s15, 3
      %p154 = pnand %p152, %p153
      %p155 = pneg %p154
      // Predicated region
      $region9: #{tpu_custom_call.1} parent=5 // pred_check
        _
      $region10: #{tpu_custom_call.1} parent=5 // pred_check_branch
        %157 = sbr.rel (%p154) target = $region12
      $region11: #{tpu_custom_call.1} parent=5 // pred_region
        %s158 = ssub.s32 %s15, 1
        // Predicated region
        $region13: #{tpu_custom_call.1} parent=11 // pred_check
          %p159 = pneg %p53
        $region14: #{tpu_custom_call.1} parent=11 // pred_check_branch
          %161 = sbr.rel (%p159) target = $region16
        $region15: #{tpu_custom_call.1} parent=11 // pred_region
          %163 = vsyncadd [#allocation3], 0
          %s164 = smul.addr %s24, 32
          %s165 = smul.addr %s164, 4
          %s166 = scalar_lea.hbm %s0, %s165
          %s167 = sshll.u32 %s166, 4
          %s168 = int_to_ptr.hbm [resolvable:$true] %s167
          %s169 = sshll.u32 [#allocation2], 4
          %s170 = int_to_ptr.vmem [resolvable:$true] %s169
          %175 = dma.hbm_to_vmem [thread:$0]  %s168, 2048, %s170, [#allocation3], 64, 64, 4
        $region16: #{tpu_custom_call.1} parent=11 // pred_fallthru
          _
        // Predicated region
        $region17: #{tpu_custom_call.1} parent=11 // pred_check
          %p176 = pneg %p74
        $region18: #{tpu_custom_call.1} parent=11 // pred_check_branch
          %178 = sbr.rel (%p176) target = $region20
        $region19: #{tpu_custom_call.1} parent=11 // pred_region
          %180 = vsyncadd [#allocation6], 0
          %s181 = sshll.u32 %s1, 4
          %s182 = int_to_ptr.hbm [resolvable:$true] %s181
          %s183 = sshll.u32 [#allocation5], 4
          %s184 = int_to_ptr.vmem [resolvable:$true] %s183
          %189 = dma.hbm_to_vmem [thread:$0]  %s182, 1024, %s184, [#allocation6], 64, 64, 4
        $region20: #{tpu_custom_call.1} parent=11 // pred_fallthru
          _
        // Predicated region
        $region21: #{tpu_custom_call.1} parent=11 // pred_check
          %p190 = pneg %p95
        $region22: #{tpu_custom_call.1} parent=11 // pred_check_branch
          %192 = sbr.rel (%p190) target = $region24
        $region23: #{tpu_custom_call.1} parent=11 // pred_region
          _
        $region24: #{tpu_custom_call.1} parent=11 // pred_fallthru
          _
        // Predicated region
        $region25: #{tpu_custom_call.1} parent=11 // pred_check
          %p193 = pneg %p116
        $region26: #{tpu_custom_call.1} parent=11 // pred_check_branch
          %195 = sbr.rel (%p193) target = $region28
        $region27: #{tpu_custom_call.1} parent=11 // pred_region
          _
        $region28: #{tpu_custom_call.1} parent=11 // pred_fallthru
          _
      $region12: #{tpu_custom_call.1} parent=5 // pred_fallthru
        _
      %p196 = scmp.lt.s32.totalorder %s15, 2
      // Predicated region
      $region29: #{tpu_custom_call.1} parent=5 // pred_check
        %p197 = pneg %p196
      $region30: #{tpu_custom_call.1} parent=5 // pred_check_branch
        %199 = sbr.rel (%p197) target = $region32
      $region31: #{tpu_custom_call.1} parent=5 // pred_region
        _
      $region32: #{tpu_custom_call.1} parent=5 // pred_fallthru
        _
      %p200 = scmp.le.s32.totalorder 1, %s15
      %p201 = scmp.lt.s32.totalorder %s15, 3
      %p202 = pnand %p200, %p201
      %p203 = pneg %p202
      // Predicated region
      $region33: #{tpu_custom_call.1} parent=5 // pred_check
        _
      $region34: #{tpu_custom_call.1} parent=5 // pred_check_branch
        %205 = sbr.rel (%p202) target = $region36
      $region35: #{tpu_custom_call.1} parent=5 // pred_region
        %s206 = ssub.s32 %s15, 1
        // Predicated region
        $region37: #{tpu_custom_call.1} parent=35 // pred_check
          %p207 = pneg %p53
        $region38: #{tpu_custom_call.1} parent=35 // pred_check_branch
          %209 = sbr.rel (%p207) target = $region40
        $region39: #{tpu_custom_call.1} parent=35 // pred_region
          %211 = dma.done [#allocation3], 2048
        $region40: #{tpu_custom_call.1} parent=35 // pred_fallthru
          _
        // Predicated region
        $region41: #{tpu_custom_call.1} parent=35 // pred_check
          %p212 = pneg %p74
        $region42: #{tpu_custom_call.1} parent=35 // pred_check_branch
          %214 = sbr.rel (%p212) target = $region44
        $region43: #{tpu_custom_call.1} parent=35 // pred_region
          %216 = dma.done [#allocation6], 1024
        $region44: #{tpu_custom_call.1} parent=35 // pred_fallthru
          _
        %p217 = pneg %p53
        %p218 = pneg %p50
        %p219 = pneg %p74
        %p220 = pneg %p71
        %p221 = pneg %p95
        %p222 = pneg %p92
        %p223 = pneg %p116
        %p224 = pneg %p113
        %p225 = pneg %p144
        %p226 = pneg %p141
        %s227 = sand.u32 %s131, 1
        %s228 = scalar_lea.sflag [#allocation4], %s227
        %s229 = sand.u32 %s131, 1
        %s230 = smul.addr %s229, 32
        %s231 = scalar_lea.vmem [#allocation7], %s230
        %s232 = smul.u32 8, %s25
        %s234 = smul.u32 %s25, 16
        %s235 = smul.u32 %s234, 2
        %s236 = smul.addr %s235, 4
        %s237 = scalar_lea.vmem [#allocation2], %s236
        %v238 = vld [vmem:[%s237] sm:$0xf]
        %v239 = vld [vmem:[%s237 + $0x4] sm:$0xf]
        %v240 = vld [vmem:[%s237 + $0x8] sm:$0xf]
        %v241 = vld [vmem:[%s237 + $0xc] sm:$0xf]
        %v242 = vld [vmem:[%s237 + $0x10] sm:$0xf]
        %v243 = vld [vmem:[%s237 + $0x14] sm:$0xf]
        %v244 = vld [vmem:[%s237 + $0x18] sm:$0xf]
        %v245 = vld [vmem:[%s237 + $0x1c] sm:$0xf]
        %v246 = vld [vmem:[%s237 + $0x20] sm:$0xf]
        %v247 = vld [vmem:[%s237 + $0x24] sm:$0xf]
        %v248 = vld [vmem:[%s237 + $0x28] sm:$0xf]
        %v249 = vld [vmem:[%s237 + $0x2c] sm:$0xf]
        %v250 = vld [vmem:[%s237 + $0x30] sm:$0xf]
        %v251 = vld [vmem:[%s237 + $0x34] sm:$0xf]
        %v252 = vld [vmem:[%s237 + $0x38] sm:$0xf]
        %v253 = vld [vmem:[%s237 + $0x3c] sm:$0xf]
        %v254 = vld [vmem:[%s237 + $0x40] sm:$0xf]
        %v255 = vld [vmem:[%s237 + $0x44] sm:$0xf]
        %v256 = vld [vmem:[%s237 + $0x48] sm:$0xf]
        %v257 = vld [vmem:[%s237 + $0x4c] sm:$0xf]
        %v258 = vld [vmem:[%s237 + $0x50] sm:$0xf]
        %v259 = vld [vmem:[%s237 + $0x54] sm:$0xf]
        %v260 = vld [vmem:[%s237 + $0x58] sm:$0xf]
        %v261 = vld [vmem:[%s237 + $0x5c] sm:$0xf]
        %v262 = vld [vmem:[%s237 + $0x60] sm:$0xf]
        %v263 = vld [vmem:[%s237 + $0x64] sm:$0xf]
        %v264 = vld [vmem:[%s237 + $0x68] sm:$0xf]
        %v265 = vld [vmem:[%s237 + $0x6c] sm:$0xf]
        %v266 = vld [vmem:[%s237 + $0x70] sm:$0xf]
        %v267 = vld [vmem:[%s237 + $0x74] sm:$0xf]
        %v268 = vld [vmem:[%s237 + $0x78] sm:$0xf]
        %v269 = vld [vmem:[%s237 + $0x7c] sm:$0xf]
        %s270 = ssub.s32 %s234, 1
        %p271 = scmp.gt.s32.totalorder %s270, 0
        %s272 = scalar_select %p271, %s270, 0
        %s273 = smul.u32 %s272, 2
        %s274 = smul.addr %s273, 4
        %s275 = scalar_lea.vmem [#allocation2], %s274
        %v276 = vld [vmem:[%s275] sm:$0xf]
        %v277 = vld [vmem:[%s275 + $0x4] sm:$0xf]
        %s278 = sadd.s32 %s234, 16
        %p279 = scmp.lt.s32.totalorder %s278, 15
        %s280 = scalar_select %p279, %s278, 15
        %s281 = smul.u32 %s280, 2
        %s282 = smul.addr %s281, 4
        %s283 = scalar_lea.vmem [#allocation2], %s282
        %v284 = vld [vmem:[%s283] sm:$0xf]
        %v285 = vld [vmem:[%s283 + $0x4] sm:$0xf]
        %p286 = scmp.eq.s32.totalorder %s25, 0
        %s287 = scalar_select %p286, 1, 0
        %v288 = vstv %s287
        %vm289 = vcmp.eq.s32.totalorder %v288, 1
        %v290 = vsel %vm289, 0, %v276
        %v291 = vsel %vm289, 0, %v277
        %v292 = vsel %vm289, 0, %v284
        %v293 = vsel %vm289, 0, %v285
        %v330 = vunpack.c.l.b16 %v290
        %v331 = vunpack.c.l.b16 %v291
        %v332 = vunpack.c.l.b16 %v238
        %v333 = vunpack.c.l.b16 %v239
        %v334 = vunpack.c.l.b16 %v240
        %v335 = vunpack.c.l.b16 %v241
        %v336 = vunpack.c.l.b16 %v242
        %v337 = vunpack.c.l.b16 %v243
        %v338 = vunpack.c.l.b16 %v244
        %v339 = vunpack.c.l.b16 %v245
        %v340 = vunpack.c.l.b16 %v246
        %v341 = vunpack.c.l.b16 %v247
        %v342 = vunpack.c.l.b16 %v248
        %v343 = vunpack.c.l.b16 %v249
        %v344 = vunpack.c.l.b16 %v250
        %v345 = vunpack.c.l.b16 %v251
        %v346 = vunpack.c.l.b16 %v252
        %v347 = vunpack.c.l.b16 %v253
        %v348 = vunpack.c.l.b16 %v254
        %v349 = vunpack.c.l.b16 %v255
        %v350 = vunpack.c.l.b16 %v256
        %v351 = vunpack.c.l.b16 %v257
        %v352 = vunpack.c.l.b16 %v258
        %v353 = vunpack.c.l.b16 %v259
        %v354 = vunpack.c.l.b16 %v260
        %v355 = vunpack.c.l.b16 %v261
        %v356 = vunpack.c.l.b16 %v262
        %v357 = vunpack.c.l.b16 %v263
        %v358 = vunpack.c.l.b16 %v264
        %v359 = vunpack.c.l.b16 %v265
        %v360 = vunpack.c.l.b16 %v266
        %v361 = vunpack.c.l.b16 %v267
        %v362 = vunpack.c.l.b16 %v268
        %v363 = vunpack.c.l.b16 %v269
        %v364 = vunpack.c.l.b16 %v292
        %v365 = vunpack.c.l.b16 %v293
        %v366 = vpack.c.b16 %v331, %v330
        %v367 = vpack.c.b16 %v333, %v332
        %v368 = vpack.c.b16 %v335, %v334
        %v369 = vpack.c.b16 %v337, %v336
        %v370 = vpack.c.b16 %v339, %v338
        %v371 = vpack.c.b16 %v341, %v340
        %v372 = vpack.c.b16 %v343, %v342
        %v373 = vpack.c.b16 %v345, %v344
        %v374 = vpack.c.b16 %v347, %v346
        %v375 = vpack.c.b16 %v349, %v348
        %v376 = vpack.c.b16 %v351, %v350
        %v377 = vpack.c.b16 %v353, %v352
        %v378 = vpack.c.b16 %v355, %v354
        %v379 = vpack.c.b16 %v357, %v356
        %v380 = vpack.c.b16 %v359, %v358
        %v381 = vpack.c.b16 %v361, %v360
        %v382 = vpack.c.b16 %v363, %v362
        %v383 = vpack.c.b16 %v365, %v364
        %v385 = vshrl.u32 %v366, 16
        %v387 = vrot.slane %v385, 7
        %v388 = vshll.u32 %v366, 16
        %v390 = vor.u32 %v387, %v388
        %v392 = vshrl.u32 %v367, 16
        %v394 = vrot.slane %v392, 7
        %v395 = vshll.u32 %v367, 16
        %v397 = vor.u32 %v394, %v395
        %v399 = vshrl.u32 %v368, 16
        %v401 = vrot.slane %v399, 7
        %v402 = vshll.u32 %v368, 16
        %v404 = vor.u32 %v401, %v402
        %v406 = vshrl.u32 %v369, 16
        %v408 = vrot.slane %v406, 7
        %v409 = vshll.u32 %v369, 16
        %v411 = vor.u32 %v408, %v409
        %v413 = vshrl.u32 %v370, 16
        %v415 = vrot.slane %v413, 7
        %v416 = vshll.u32 %v370, 16
        %v418 = vor.u32 %v415, %v416
        %v420 = vshrl.u32 %v371, 16
        %v422 = vrot.slane %v420, 7
        %v423 = vshll.u32 %v371, 16
        %v425 = vor.u32 %v422, %v423
        %v427 = vshrl.u32 %v372, 16
        %v429 = vrot.slane %v427, 7
        %v430 = vshll.u32 %v372, 16
        %v432 = vor.u32 %v429, %v430
        %v434 = vshrl.u32 %v373, 16
        %v436 = vrot.slane %v434, 7
        %v437 = vshll.u32 %v373, 16
        %v439 = vor.u32 %v436, %v437
        %v441 = vshrl.u32 %v374, 16
        %v443 = vrot.slane %v441, 7
        %v444 = vshll.u32 %v374, 16
        %v446 = vor.u32 %v443, %v444
        %v448 = vshrl.u32 %v375, 16
        %v450 = vrot.slane %v448, 7
        %v451 = vshll.u32 %v375, 16
        %v453 = vor.u32 %v450, %v451
        %v455 = vshrl.u32 %v376, 16
        %v457 = vrot.slane %v455, 7
        %v458 = vshll.u32 %v376, 16
        %v460 = vor.u32 %v457, %v458
        %v462 = vshrl.u32 %v377, 16
        %v464 = vrot.slane %v462, 7
        %v465 = vshll.u32 %v377, 16
        %v467 = vor.u32 %v464, %v465
        %v469 = vshrl.u32 %v378, 16
        %v471 = vrot.slane %v469, 7
        %v472 = vshll.u32 %v378, 16
        %v474 = vor.u32 %v471, %v472
        %v476 = vshrl.u32 %v379, 16
        %v478 = vrot.slane %v476, 7
        %v479 = vshll.u32 %v379, 16
        %v481 = vor.u32 %v478, %v479
        %v483 = vshrl.u32 %v380, 16
        %v485 = vrot.slane %v483, 7
        %v486 = vshll.u32 %v380, 16
        %v488 = vor.u32 %v485, %v486
        %v490 = vshrl.u32 %v381, 16
        %v492 = vrot.slane %v490, 7
        %v493 = vshll.u32 %v381, 16
        %v495 = vor.u32 %v492, %v493
        %v497 = vshrl.u32 %v382, 16
        %v499 = vrot.slane %v497, 7
        %v500 = vshll.u32 %v382, 16
        %v502 = vor.u32 %v499, %v500
        %v504 = vshrl.u32 %v383, 16
        %v506 = vrot.slane %v504, 7
        %v507 = vshll.u32 %v383, 16
        %v509 = vor.u32 %v506, %v507
        %vm546 = vcmask 1040384
        %vm547 = vsmask.f32 256
        %vm548 = vmand %vm546, %vm547
        %v549 = vsel %vm548, 0, %v390
        %v550 = vsel %vm548, 0, %v397
        %v551 = vsel %vm548, 0, %v404
        %v552 = vsel %vm548, 0, %v411
        %v553 = vsel %vm548, 0, %v418
        %v554 = vsel %vm548, 0, %v425
        %v555 = vsel %vm548, 0, %v432
        %v556 = vsel %vm548, 0, %v439
        %v557 = vsel %vm548, 0, %v446
        %v558 = vsel %vm548, 0, %v453
        %v559 = vsel %vm548, 0, %v460
        %v560 = vsel %vm548, 0, %v467
        %v561 = vsel %vm548, 0, %v474
        %v562 = vsel %vm548, 0, %v481
        %v563 = vsel %vm548, 0, %v488
        %v564 = vsel %vm548, 0, %v495
        %v565 = vsel %vm548, 0, %v502
        %v566 = vsel %vm548, 0, %v509
        %v567 = vsel %vm548, %v387, 0
        %v568 = vsel %vm548, %v394, 0
        %v569 = vsel %vm548, %v401, 0
        %v570 = vsel %vm548, %v408, 0
        %v571 = vsel %vm548, %v415, 0
        %v572 = vsel %vm548, %v422, 0
        %v573 = vsel %vm548, %v429, 0
        %v574 = vsel %vm548, %v436, 0
        %v575 = vsel %vm548, %v443, 0
        %v576 = vsel %vm548, %v450, 0
        %v577 = vsel %vm548, %v457, 0
        %v578 = vsel %vm548, %v464, 0
        %v579 = vsel %vm548, %v471, 0
        %v580 = vsel %vm548, %v478, 0
        %v581 = vsel %vm548, %v485, 0
        %v582 = vsel %vm548, %v492, 0
        %v583 = vsel %vm548, %v499, 0
        %v584 = vsel %vm548, %v506, 0
        %vm585 = vsmask.f32 7424
        %v587 = vshrl.u32 %v549, 16
        %v589 = vshll.u32 %v549, 16
        %v591 = vrot.slane %v589, 1
        %v592 = vor.u32 %v587, %v591
        %v594 = vshll.u32 %v567, 16
        %v596 = vrot.slane %v594, 1
        %v597 = vsel %vm585, %v592, %v596
        %v599 = vshrl.u32 %v550, 16
        %v601 = vshll.u32 %v550, 16
        %v603 = vrot.slane %v601, 1
        %v604 = vor.u32 %v599, %v603
        %v606 = vshll.u32 %v568, 16
        %v608 = vrot.slane %v606, 1
        %v609 = vsel %vm585, %v604, %v608
        %v611 = vshrl.u32 %v551, 16
        %v613 = vshll.u32 %v551, 16
        %v615 = vrot.slane %v613, 1
        %v616 = vor.u32 %v611, %v615
        %v618 = vshll.u32 %v569, 16
        %v620 = vrot.slane %v618, 1
        %v621 = vsel %vm585, %v616, %v620
        %v623 = vshrl.u32 %v552, 16
        %v625 = vshll.u32 %v552, 16
        %v627 = vrot.slane %v625, 1
        %v628 = vor.u32 %v623, %v627
        %v630 = vshll.u32 %v570, 16
        %v632 = vrot.slane %v630, 1
        %v633 = vsel %vm585, %v628, %v632
        %v635 = vshrl.u32 %v553, 16
        %v637 = vshll.u32 %v553, 16
        %v639 = vrot.slane %v637, 1
        %v640 = vor.u32 %v635, %v639
        %v642 = vshll.u32 %v571, 16
        %v644 = vrot.slane %v642, 1
        %v645 = vsel %vm585, %v640, %v644
        %v647 = vshrl.u32 %v554, 16
        %v649 = vshll.u32 %v554, 16
        %v651 = vrot.slane %v649, 1
        %v652 = vor.u32 %v647, %v651
        %v654 = vshll.u32 %v572, 16
        %v656 = vrot.slane %v654, 1
        %v657 = vsel %vm585, %v652, %v656
        %v659 = vshrl.u32 %v555, 16
        %v661 = vshll.u32 %v555, 16
        %v663 = vrot.slane %v661, 1
        %v664 = vor.u32 %v659, %v663
        %v666 = vshll.u32 %v573, 16
        %v668 = vrot.slane %v666, 1
        %v669 = vsel %vm585, %v664, %v668
        %v671 = vshrl.u32 %v556, 16
        %v673 = vshll.u32 %v556, 16
        %v675 = vrot.slane %v673, 1
        %v676 = vor.u32 %v671, %v675
        %v678 = vshll.u32 %v574, 16
        %v680 = vrot.slane %v678, 1
        %v681 = vsel %vm585, %v676, %v680
        %v683 = vshrl.u32 %v557, 16
        %v685 = vshll.u32 %v557, 16
        %v687 = vrot.slane %v685, 1
        %v688 = vor.u32 %v683, %v687
        %v690 = vshll.u32 %v575, 16
        %v692 = vrot.slane %v690, 1
        %v693 = vsel %vm585, %v688, %v692
        %v695 = vshrl.u32 %v558, 16
        %v697 = vshll.u32 %v558, 16
        %v699 = vrot.slane %v697, 1
        %v700 = vor.u32 %v695, %v699
        %v702 = vshll.u32 %v576, 16
        %v704 = vrot.slane %v702, 1
        %v705 = vsel %vm585, %v700, %v704
        %v707 = vshrl.u32 %v559, 16
        %v709 = vshll.u32 %v559, 16
        %v711 = vrot.slane %v709, 1
        %v712 = vor.u32 %v707, %v711
        %v714 = vshll.u32 %v577, 16
        %v716 = vrot.slane %v714, 1
        %v717 = vsel %vm585, %v712, %v716
        %v719 = vshrl.u32 %v560, 16
        %v721 = vshll.u32 %v560, 16
        %v723 = vrot.slane %v721, 1
        %v724 = vor.u32 %v719, %v723
        %v726 = vshll.u32 %v578, 16
        %v728 = vrot.slane %v726, 1
        %v729 = vsel %vm585, %v724, %v728
        %v731 = vshrl.u32 %v561, 16
        %v733 = vshll.u32 %v561, 16
        %v735 = vrot.slane %v733, 1
        %v736 = vor.u32 %v731, %v735
        %v738 = vshll.u32 %v579, 16
        %v740 = vrot.slane %v738, 1
        %v741 = vsel %vm585, %v736, %v740
        %v743 = vshrl.u32 %v562, 16
        %v745 = vshll.u32 %v562, 16
        %v747 = vrot.slane %v745, 1
        %v748 = vor.u32 %v743, %v747
        %v750 = vshll.u32 %v580, 16
        %v752 = vrot.slane %v750, 1
        %v753 = vsel %vm585, %v748, %v752
        %v755 = vshrl.u32 %v563, 16
        %v757 = vshll.u32 %v563, 16
        %v759 = vrot.slane %v757, 1
        %v760 = vor.u32 %v755, %v759
        %v762 = vshll.u32 %v581, 16
        %v764 = vrot.slane %v762, 1
        %v765 = vsel %vm585, %v760, %v764
        %v767 = vshrl.u32 %v564, 16
        %v769 = vshll.u32 %v564, 16
        %v771 = vrot.slane %v769, 1
        %v772 = vor.u32 %v767, %v771
        %v774 = vshll.u32 %v582, 16
        %v776 = vrot.slane %v774, 1
        %v777 = vsel %vm585, %v772, %v776
        %778 = vrot.lane.b32.xlu0 %v597, 3
        %v779 = vpop.permute.xlu0 %778
        %780 = vrot.lane.b32.xlu0 %v609, 3
        %v781 = vpop.permute.xlu0 %780
        %782 = vrot.lane.b32.xlu0 %v621, 3
        %v783 = vpop.permute.xlu0 %782
        %784 = vrot.lane.b32.xlu0 %v633, 3
        %v785 = vpop.permute.xlu0 %784
        %786 = vrot.lane.b32.xlu0 %v645, 3
        %v787 = vpop.permute.xlu0 %786
        %788 = vrot.lane.b32.xlu0 %v657, 3
        %v789 = vpop.permute.xlu0 %788
        %790 = vrot.lane.b32.xlu0 %v669, 3
        %v791 = vpop.permute.xlu0 %790
        %792 = vrot.lane.b32.xlu0 %v681, 3
        %v793 = vpop.permute.xlu0 %792
        %794 = vrot.lane.b32.xlu0 %v693, 3
        %v795 = vpop.permute.xlu0 %794
        %796 = vrot.lane.b32.xlu0 %v705, 3
        %v797 = vpop.permute.xlu0 %796
        %798 = vrot.lane.b32.xlu0 %v717, 3
        %v799 = vpop.permute.xlu0 %798
        %800 = vrot.lane.b32.xlu0 %v729, 3
        %v801 = vpop.permute.xlu0 %800
        %802 = vrot.lane.b32.xlu0 %v741, 3
        %v803 = vpop.permute.xlu0 %802
        %804 = vrot.lane.b32.xlu0 %v753, 3
        %v805 = vpop.permute.xlu0 %804
        %806 = vrot.lane.b32.xlu0 %v765, 3
        %v807 = vpop.permute.xlu0 %806
        %808 = vrot.lane.b32.xlu0 %v777, 3
        %v809 = vpop.permute.xlu0 %808
        %vm842 = vcmask 1046528
        %v843 = vrot.slane %v549, 1
        %v844 = vrot.slane %v567, 1
        %v845 = vsel %vm842, %v843, %v844
        %v846 = vrot.slane %v550, 1
        %v847 = vrot.slane %v568, 1
        %v848 = vsel %vm842, %v846, %v847
        %v849 = vrot.slane %v551, 1
        %v850 = vrot.slane %v569, 1
        %v851 = vsel %vm842, %v849, %v850
        %v852 = vrot.slane %v552, 1
        %v853 = vrot.slane %v570, 1
        %v854 = vsel %vm842, %v852, %v853
        %v855 = vrot.slane %v553, 1
        %v856 = vrot.slane %v571, 1
        %v857 = vsel %vm842, %v855, %v856
        %v858 = vrot.slane %v554, 1
        %v859 = vrot.slane %v572, 1
        %v860 = vsel %vm842, %v858, %v859
        %v861 = vrot.slane %v555, 1
        %v862 = vrot.slane %v573, 1
        %v863 = vsel %vm842, %v861, %v862
        %v864 = vrot.slane %v556, 1
        %v865 = vrot.slane %v574, 1
        %v866 = vsel %vm842, %v864, %v865
        %v867 = vrot.slane %v557, 1
        %v868 = vrot.slane %v575, 1
        %v869 = vsel %vm842, %v867, %v868
        %v870 = vrot.slane %v558, 1
        %v871 = vrot.slane %v576, 1
        %v872 = vsel %vm842, %v870, %v871
        %v873 = vrot.slane %v559, 1
        %v874 = vrot.slane %v577, 1
        %v875 = vsel %vm842, %v873, %v874
        %v876 = vrot.slane %v560, 1
        %v877 = vrot.slane %v578, 1
        %v878 = vsel %vm842, %v876, %v877
        %v879 = vrot.slane %v561, 1
        %v880 = vrot.slane %v579, 1
        %v881 = vsel %vm842, %v879, %v880
        %v882 = vrot.slane %v562, 1
        %v883 = vrot.slane %v580, 1
        %v884 = vsel %vm842, %v882, %v883
        %v885 = vrot.slane %v563, 1
        %v886 = vrot.slane %v581, 1
        %v887 = vsel %vm842, %v885, %v886
        %v888 = vrot.slane %v564, 1
        %v889 = vrot.slane %v582, 1
        %v890 = vsel %vm842, %v888, %v889
        %891 = vrot.lane.b32.xlu0 %v845, 6
        %v892 = vpop.permute.xlu0 %891
        %893 = vrot.lane.b32.xlu0 %v848, 6
        %v894 = vpop.permute.xlu0 %893
        %895 = vrot.lane.b32.xlu0 %v851, 6
        %v896 = vpop.permute.xlu0 %895
        %897 = vrot.lane.b32.xlu0 %v854, 6
        %v898 = vpop.permute.xlu0 %897
        %899 = vrot.lane.b32.xlu0 %v857, 6
        %v900 = vpop.permute.xlu0 %899
        %901 = vrot.lane.b32.xlu0 %v860, 6
        %v902 = vpop.permute.xlu0 %901
        %903 = vrot.lane.b32.xlu0 %v863, 6
        %v904 = vpop.permute.xlu0 %903
        %905 = vrot.lane.b32.xlu0 %v866, 6
        %v906 = vpop.permute.xlu0 %905
        %907 = vrot.lane.b32.xlu0 %v869, 6
        %v908 = vpop.permute.xlu0 %907
        %909 = vrot.lane.b32.xlu0 %v872, 6
        %v910 = vpop.permute.xlu0 %909
        %911 = vrot.lane.b32.xlu0 %v875, 6
        %v912 = vpop.permute.xlu0 %911
        %913 = vrot.lane.b32.xlu0 %v878, 6
        %v914 = vpop.permute.xlu0 %913
        %915 = vrot.lane.b32.xlu0 %v881, 6
        %v916 = vpop.permute.xlu0 %915
        %917 = vrot.lane.b32.xlu0 %v884, 6
        %v918 = vpop.permute.xlu0 %917
        %919 = vrot.lane.b32.xlu0 %v887, 6
        %v920 = vpop.permute.xlu0 %919
        %921 = vrot.lane.b32.xlu0 %v890, 6
        %v922 = vpop.permute.xlu0 %921
        %924 = vrot.lane.b32.xlu0 %v550, 9
        %v925 = vpop.permute.xlu0 %924
        %926 = vrot.lane.b32.xlu0 %v551, 9
        %v927 = vpop.permute.xlu0 %926
        %928 = vrot.lane.b32.xlu0 %v552, 9
        %v929 = vpop.permute.xlu0 %928
        %930 = vrot.lane.b32.xlu0 %v553, 9
        %v931 = vpop.permute.xlu0 %930
        %932 = vrot.lane.b32.xlu0 %v554, 9
        %v933 = vpop.permute.xlu0 %932
        %934 = vrot.lane.b32.xlu0 %v555, 9
        %v935 = vpop.permute.xlu0 %934
        %936 = vrot.lane.b32.xlu0 %v556, 9
        %v937 = vpop.permute.xlu0 %936
        %938 = vrot.lane.b32.xlu0 %v557, 9
        %v939 = vpop.permute.xlu0 %938
        %940 = vrot.lane.b32.xlu0 %v558, 9
        %v941 = vpop.permute.xlu0 %940
        %942 = vrot.lane.b32.xlu0 %v559, 9
        %v943 = vpop.permute.xlu0 %942
        %944 = vrot.lane.b32.xlu0 %v560, 9
        %v945 = vpop.permute.xlu0 %944
        %946 = vrot.lane.b32.xlu0 %v561, 9
        %v947 = vpop.permute.xlu0 %946
        %948 = vrot.lane.b32.xlu0 %v562, 9
        %v949 = vpop.permute.xlu0 %948
        %950 = vrot.lane.b32.xlu0 %v563, 9
        %v951 = vpop.permute.xlu0 %950
        %952 = vrot.lane.b32.xlu0 %v564, 9
        %v953 = vpop.permute.xlu0 %952
        %954 = vrot.lane.b32.xlu0 %v565, 9
        %v955 = vpop.permute.xlu0 %954
        %v957 = vshrl.u32 %v565, 16
        %v959 = vshll.u32 %v565, 16
        %v961 = vrot.slane %v959, 1
        %v962 = vor.u32 %v957, %v961
        %v964 = vshll.u32 %v583, 16
        %v966 = vrot.slane %v964, 1
        %v967 = vsel %vm585, %v962, %v966
        %968 = vrot.lane.b32.xlu0 %v609, 12
        %v969 = vpop.permute.xlu0 %968
        %970 = vrot.lane.b32.xlu0 %v621, 12
        %v971 = vpop.permute.xlu0 %970
        %972 = vrot.lane.b32.xlu0 %v633, 12
        %v973 = vpop.permute.xlu0 %972
        %974 = vrot.lane.b32.xlu0 %v645, 12
        %v975 = vpop.permute.xlu0 %974
        %976 = vrot.lane.b32.xlu0 %v657, 12
        %v977 = vpop.permute.xlu0 %976
        %978 = vrot.lane.b32.xlu0 %v669, 12
        %v979 = vpop.permute.xlu0 %978
        %980 = vrot.lane.b32.xlu0 %v681, 12
        %v981 = vpop.permute.xlu0 %980
        %982 = vrot.lane.b32.xlu0 %v693, 12
        %v983 = vpop.permute.xlu0 %982
        %984 = vrot.lane.b32.xlu0 %v705, 12
        %v985 = vpop.permute.xlu0 %984
        %986 = vrot.lane.b32.xlu0 %v717, 12
        %v987 = vpop.permute.xlu0 %986
        %988 = vrot.lane.b32.xlu0 %v729, 12
        %v989 = vpop.permute.xlu0 %988
        %990 = vrot.lane.b32.xlu0 %v741, 12
        %v991 = vpop.permute.xlu0 %990
        %992 = vrot.lane.b32.xlu0 %v753, 12
        %v993 = vpop.permute.xlu0 %992
        %994 = vrot.lane.b32.xlu0 %v765, 12
        %v995 = vpop.permute.xlu0 %994
        %996 = vrot.lane.b32.xlu0 %v777, 12
        %v997 = vpop.permute.xlu0 %996
        %998 = vrot.lane.b32.xlu0 %v967, 12
        %v999 = vpop.permute.xlu0 %998
        %v1001 = vrot.slane %v565, 1
        %v1002 = vrot.slane %v583, 1
        %v1003 = vsel %vm842, %v1001, %v1002
        %1004 = vrot.lane.b32.xlu0 %v848, 15
        %v1005 = vpop.permute.xlu0 %1004
        %1006 = vrot.lane.b32.xlu0 %v851, 15
        %v1007 = vpop.permute.xlu0 %1006
        %1008 = vrot.lane.b32.xlu0 %v854, 15
        %v1009 = vpop.permute.xlu0 %1008
        %1010 = vrot.lane.b32.xlu0 %v857, 15
        %v1011 = vpop.permute.xlu0 %1010
        %1012 = vrot.lane.b32.xlu0 %v860, 15
        %v1013 = vpop.permute.xlu0 %1012
        %1014 = vrot.lane.b32.xlu0 %v863, 15
        %v1015 = vpop.permute.xlu0 %1014
        %1016 = vrot.lane.b32.xlu0 %v866, 15
        %v1017 = vpop.permute.xlu0 %1016
        %1018 = vrot.lane.b32.xlu0 %v869, 15
        %v1019 = vpop.permute.xlu0 %1018
        %1020 = vrot.lane.b32.xlu0 %v872, 15
        %v1021 = vpop.permute.xlu0 %1020
        %1022 = vrot.lane.b32.xlu0 %v875, 15
        %v1023 = vpop.permute.xlu0 %1022
        %1024 = vrot.lane.b32.xlu0 %v878, 15
        %v1025 = vpop.permute.xlu0 %1024
        %1026 = vrot.lane.b32.xlu0 %v881, 15
        %v1027 = vpop.permute.xlu0 %1026
        %1028 = vrot.lane.b32.xlu0 %v884, 15
        %v1029 = vpop.permute.xlu0 %1028
        %1030 = vrot.lane.b32.xlu0 %v887, 15
        %v1031 = vpop.permute.xlu0 %1030
        %1032 = vrot.lane.b32.xlu0 %v890, 15
        %v1033 = vpop.permute.xlu0 %1032
        %1034 = vrot.lane.b32.xlu0 %v1003, 15
        %v1035 = vpop.permute.xlu0 %1034
        %1037 = vrot.lane.b32.xlu0 %v551, 18
        %v1038 = vpop.permute.xlu0 %1037
        %1039 = vrot.lane.b32.xlu0 %v552, 18
        %v1040 = vpop.permute.xlu0 %1039
        %1041 = vrot.lane.b32.xlu0 %v553, 18
        %v1042 = vpop.permute.xlu0 %1041
        %1043 = vrot.lane.b32.xlu0 %v554, 18
        %v1044 = vpop.permute.xlu0 %1043
        %1045 = vrot.lane.b32.xlu0 %v555, 18
        %v1046 = vpop.permute.xlu0 %1045
        %1047 = vrot.lane.b32.xlu0 %v556, 18
        %v1048 = vpop.permute.xlu0 %1047
        %1049 = vrot.lane.b32.xlu0 %v557, 18
        %v1050 = vpop.permute.xlu0 %1049
        %1051 = vrot.lane.b32.xlu0 %v558, 18
        %v1052 = vpop.permute.xlu0 %1051
        %1053 = vrot.lane.b32.xlu0 %v559, 18
        %v1054 = vpop.permute.xlu0 %1053
        %1055 = vrot.lane.b32.xlu0 %v560, 18
        %v1056 = vpop.permute.xlu0 %1055
        %1057 = vrot.lane.b32.xlu0 %v561, 18
        %v1058 = vpop.permute.xlu0 %1057
        %1059 = vrot.lane.b32.xlu0 %v562, 18
        %v1060 = vpop.permute.xlu0 %1059
        %1061 = vrot.lane.b32.xlu0 %v563, 18
        %v1062 = vpop.permute.xlu0 %1061
        %1063 = vrot.lane.b32.xlu0 %v564, 18
        %v1064 = vpop.permute.xlu0 %1063
        %1065 = vrot.lane.b32.xlu0 %v565, 18
        %v1066 = vpop.permute.xlu0 %1065
        %1067 = vrot.lane.b32.xlu0 %v566, 18
        %v1068 = vpop.permute.xlu0 %1067
        %v1070 = vshrl.u32 %v566, 16
        %v1072 = vshll.u32 %v566, 16
        %v1074 = vrot.slane %v1072, 1
        %v1075 = vor.u32 %v1070, %v1074
        %v1077 = vshll.u32 %v584, 16
        %v1079 = vrot.slane %v1077, 1
        %v1080 = vsel %vm585, %v1075, %v1079
        %1081 = vrot.lane.b32.xlu0 %v621, 21
        %v1082 = vpop.permute.xlu0 %1081
        %1083 = vrot.lane.b32.xlu0 %v633, 21
        %v1084 = vpop.permute.xlu0 %1083
        %1085 = vrot.lane.b32.xlu0 %v645, 21
        %v1086 = vpop.permute.xlu0 %1085
        %1087 = vrot.lane.b32.xlu0 %v657, 21
        %v1088 = vpop.permute.xlu0 %1087
        %1089 = vrot.lane.b32.xlu0 %v669, 21
        %v1090 = vpop.permute.xlu0 %1089
        %1091 = vrot.lane.b32.xlu0 %v681, 21
        %v1092 = vpop.permute.xlu0 %1091
        %1093 = vrot.lane.b32.xlu0 %v693, 21
        %v1094 = vpop.permute.xlu0 %1093
        %1095 = vrot.lane.b32.xlu0 %v705, 21
        %v1096 = vpop.permute.xlu0 %1095
        %1097 = vrot.lane.b32.xlu0 %v717, 21
        %v1098 = vpop.permute.xlu0 %1097
        %1099 = vrot.lane.b32.xlu0 %v729, 21
        %v1100 = vpop.permute.xlu0 %1099
        %1101 = vrot.lane.b32.xlu0 %v741, 21
        %v1102 = vpop.permute.xlu0 %1101
        %1103 = vrot.lane.b32.xlu0 %v753, 21
        %v1104 = vpop.permute.xlu0 %1103
        %1105 = vrot.lane.b32.xlu0 %v765, 21
        %v1106 = vpop.permute.xlu0 %1105
        %1107 = vrot.lane.b32.xlu0 %v777, 21
        %v1108 = vpop.permute.xlu0 %1107
        %1109 = vrot.lane.b32.xlu0 %v967, 21
        %v1110 = vpop.permute.xlu0 %1109
        %1111 = vrot.lane.b32.xlu0 %v1080, 21
        %v1112 = vpop.permute.xlu0 %1111
        %v1114 = vrot.slane %v566, 1
        %v1115 = vrot.slane %v584, 1
        %v1116 = vsel %vm842, %v1114, %v1115
        %1117 = vrot.lane.b32.xlu0 %v851, 24
        %v1118 = vpop.permute.xlu0 %1117
        %1119 = vrot.lane.b32.xlu0 %v854, 24
        %v1120 = vpop.permute.xlu0 %1119
        %1121 = vrot.lane.b32.xlu0 %v857, 24
        %v1122 = vpop.permute.xlu0 %1121
        %1123 = vrot.lane.b32.xlu0 %v860, 24
        %v1124 = vpop.permute.xlu0 %1123
        %1125 = vrot.lane.b32.xlu0 %v863, 24
        %v1126 = vpop.permute.xlu0 %1125
        %1127 = vrot.lane.b32.xlu0 %v866, 24
        %v1128 = vpop.permute.xlu0 %1127
        %1129 = vrot.lane.b32.xlu0 %v869, 24
        %v1130 = vpop.permute.xlu0 %1129
        %1131 = vrot.lane.b32.xlu0 %v872, 24
        %v1132 = vpop.permute.xlu0 %1131
        %1133 = vrot.lane.b32.xlu0 %v875, 24
        %v1134 = vpop.permute.xlu0 %1133
        %1135 = vrot.lane.b32.xlu0 %v878, 24
        %v1136 = vpop.permute.xlu0 %1135
        %1137 = vrot.lane.b32.xlu0 %v881, 24
        %v1138 = vpop.permute.xlu0 %1137
        %1139 = vrot.lane.b32.xlu0 %v884, 24
        %v1140 = vpop.permute.xlu0 %1139
        %1141 = vrot.lane.b32.xlu0 %v887, 24
        %v1142 = vpop.permute.xlu0 %1141
        %1143 = vrot.lane.b32.xlu0 %v890, 24
        %v1144 = vpop.permute.xlu0 %1143
        %1145 = vrot.lane.b32.xlu0 %v1003, 24
        %v1146 = vpop.permute.xlu0 %1145
        %1147 = vrot.lane.b32.xlu0 %v1116, 24
        %v1148 = vpop.permute.xlu0 %1147
        %vm1149 = vcmask 23552
        %v1151 = vsel %vm1149, %v549, %v779
        %v1153 = vsel %vm1149, %v550, %v781
        %v1155 = vsel %vm1149, %v551, %v783
        %v1157 = vsel %vm1149, %v552, %v785
        %v1159 = vsel %vm1149, %v553, %v787
        %v1161 = vsel %vm1149, %v554, %v789
        %v1163 = vsel %vm1149, %v555, %v791
        %v1165 = vsel %vm1149, %v556, %v793
        %v1167 = vsel %vm1149, %v557, %v795
        %v1169 = vsel %vm1149, %v558, %v797
        %v1171 = vsel %vm1149, %v559, %v799
        %v1173 = vsel %vm1149, %v560, %v801
        %v1175 = vsel %vm1149, %v561, %v803
        %v1177 = vsel %vm1149, %v562, %v805
        %v1179 = vsel %vm1149, %v563, %v807
        %v1181 = vsel %vm1149, %v564, %v809
        %vm1182 = vcmask 48128
        %v1184 = vsel %vm1182, %v1151, %v892
        %v1186 = vsel %vm1182, %v1153, %v894
        %v1188 = vsel %vm1182, %v1155, %v896
        %v1190 = vsel %vm1182, %v1157, %v898
        %v1192 = vsel %vm1182, %v1159, %v900
        %v1194 = vsel %vm1182, %v1161, %v902
        %v1196 = vsel %vm1182, %v1163, %v904
        %v1198 = vsel %vm1182, %v1165, %v906
        %v1200 = vsel %vm1182, %v1167, %v908
        %v1202 = vsel %vm1182, %v1169, %v910
        %v1204 = vsel %vm1182, %v1171, %v912
        %v1206 = vsel %vm1182, %v1173, %v914
        %v1208 = vsel %vm1182, %v1175, %v916
        %v1210 = vsel %vm1182, %v1177, %v918
        %v1212 = vsel %vm1182, %v1179, %v920
        %v1214 = vsel %vm1182, %v1181, %v922
        %vm1215 = vcmask 72704
        %v1217 = vsel %vm1215, %v1184, %v925
        %v1219 = vsel %vm1215, %v1186, %v927
        %v1221 = vsel %vm1215, %v1188, %v929
        %v1223 = vsel %vm1215, %v1190, %v931
        %v1225 = vsel %vm1215, %v1192, %v933
        %v1227 = vsel %vm1215, %v1194, %v935
        %v1229 = vsel %vm1215, %v1196, %v937
        %v1231 = vsel %vm1215, %v1198, %v939
        %v1233 = vsel %vm1215, %v1200, %v941
        %v1235 = vsel %vm1215, %v1202, %v943
        %v1237 = vsel %vm1215, %v1204, %v945
        %v1239 = vsel %vm1215, %v1206, %v947
        %v1241 = vsel %vm1215, %v1208, %v949
        %v1243 = vsel %vm1215, %v1210, %v951
        %v1245 = vsel %vm1215, %v1212, %v953
        %v1247 = vsel %vm1215, %v1214, %v955
        %vm1248 = vcmask 97280
        %v1250 = vsel %vm1248, %v1217, %v969
        %v1252 = vsel %vm1248, %v1219, %v971
        %v1254 = vsel %vm1248, %v1221, %v973
        %v1256 = vsel %vm1248, %v1223, %v975
        %v1258 = vsel %vm1248, %v1225, %v977
        %v1260 = vsel %vm1248, %v1227, %v979
        %v1262 = vsel %vm1248, %v1229, %v981
        %v1264 = vsel %vm1248, %v1231, %v983
        %v1266 = vsel %vm1248, %v1233, %v985
        %v1268 = vsel %vm1248, %v1235, %v987
        %v1270 = vsel %vm1248, %v1237, %v989
        %v1272 = vsel %vm1248, %v1239, %v991
        %v1274 = vsel %vm1248, %v1241, %v993
        %v1276 = vsel %vm1248, %v1243, %v995
        %v1278 = vsel %vm1248, %v1245, %v997
        %v1280 = vsel %vm1248, %v1247, %v999
        %vm1281 = vcmask 121856
        %v1283 = vsel %vm1281, %v1250, %v1005
        %v1285 = vsel %vm1281, %v1252, %v1007
        %v1287 = vsel %vm1281, %v1254, %v1009
        %v1289 = vsel %vm1281, %v1256, %v1011
        %v1291 = vsel %vm1281, %v1258, %v1013
        %v1293 = vsel %vm1281, %v1260, %v1015
        %v1295 = vsel %vm1281, %v1262, %v1017
        %v1297 = vsel %vm1281, %v1264, %v1019
        %v1299 = vsel %vm1281, %v1266, %v1021
        %v1301 = vsel %vm1281, %v1268, %v1023
        %v1303 = vsel %vm1281, %v1270, %v1025
        %v1305 = vsel %vm1281, %v1272, %v1027
        %v1307 = vsel %vm1281, %v1274, %v1029
        %v1309 = vsel %vm1281, %v1276, %v1031
        %v1311 = vsel %vm1281, %v1278, %v1033
        %v1313 = vsel %vm1281, %v1280, %v1035
        %vm1314 = vcmask 146432
        %v1316 = vsel %vm1314, %v1283, %v1038
        %v1318 = vsel %vm1314, %v1285, %v1040
        %v1320 = vsel %vm1314, %v1287, %v1042
        %v1322 = vsel %vm1314, %v1289, %v1044
        %v1324 = vsel %vm1314, %v1291, %v1046
        %v1326 = vsel %vm1314, %v1293, %v1048
        %v1328 = vsel %vm1314, %v1295, %v1050
        %v1330 = vsel %vm1314, %v1297, %v1052
        %v1332 = vsel %vm1314, %v1299, %v1054
        %v1334 = vsel %vm1314, %v1301, %v1056
        %v1336 = vsel %vm1314, %v1303, %v1058
        %v1338 = vsel %vm1314, %v1305, %v1060
        %v1340 = vsel %vm1314, %v1307, %v1062
        %v1342 = vsel %vm1314, %v1309, %v1064
        %v1344 = vsel %vm1314, %v1311, %v1066
        %v1346 = vsel %vm1314, %v1313, %v1068
        %vm1347 = vcmask 171008
        %v1349 = vsel %vm1347, %v1316, %v1082
        %v1351 = vsel %vm1347, %v1318, %v1084
        %v1353 = vsel %vm1347, %v1320, %v1086
        %v1355 = vsel %vm1347, %v1322, %v1088
        %v1357 = vsel %vm1347, %v1324, %v1090
        %v1359 = vsel %vm1347, %v1326, %v1092
        %v1361 = vsel %vm1347, %v1328, %v1094
        %v1363 = vsel %vm1347, %v1330, %v1096
        %v1365 = vsel %vm1347, %v1332, %v1098
        %v1367 = vsel %vm1347, %v1334, %v1100
        %v1369 = vsel %vm1347, %v1336, %v1102
        %v1371 = vsel %vm1347, %v1338, %v1104
        %v1373 = vsel %vm1347, %v1340, %v1106
        %v1375 = vsel %vm1347, %v1342, %v1108
        %v1377 = vsel %vm1347, %v1344, %v1110
        %v1379 = vsel %vm1347, %v1346, %v1112
        %vm1380 = vcmask 195584
        %v1382 = vsel %vm1380, %v1349, %v1118
        %v1384 = vsel %vm1380, %v1351, %v1120
        %v1386 = vsel %vm1380, %v1353, %v1122
        %v1388 = vsel %vm1380, %v1355, %v1124
        %v1390 = vsel %vm1380, %v1357, %v1126
        %v1392 = vsel %vm1380, %v1359, %v1128
        %v1394 = vsel %vm1380, %v1361, %v1130
        %v1396 = vsel %vm1380, %v1363, %v1132
        %v1398 = vsel %vm1380, %v1365, %v1134
        %v1400 = vsel %vm1380, %v1367, %v1136
        %v1402 = vsel %vm1380, %v1369, %v1138
        %v1404 = vsel %vm1380, %v1371, %v1140
        %v1406 = vsel %vm1380, %v1373, %v1142
        %v1408 = vsel %vm1380, %v1375, %v1144
        %v1410 = vsel %vm1380, %v1377, %v1146
        %v1412 = vsel %vm1380, %v1379, %v1148
        %vm1413 = vcmask 220160
        %v1415 = vsel %vm1413, %v1382, 0
        %v1417 = vsel %vm1413, %v1384, 0
        %v1419 = vsel %vm1413, %v1386, 0
        %v1421 = vsel %vm1413, %v1388, 0
        %v1423 = vsel %vm1413, %v1390, 0
        %v1425 = vsel %vm1413, %v1392, 0
        %v1427 = vsel %vm1413, %v1394, 0
        %v1429 = vsel %vm1413, %v1396, 0
        %v1431 = vsel %vm1413, %v1398, 0
        %v1433 = vsel %vm1413, %v1400, 0
        %v1435 = vsel %vm1413, %v1402, 0
        %v1437 = vsel %vm1413, %v1404, 0
        %v1439 = vsel %vm1413, %v1406, 0
        %v1441 = vsel %vm1413, %v1408, 0
        %v1443 = vsel %vm1413, %v1410, 0
        %v1445 = vsel %vm1413, %v1412, 0
        %v1447 = vld [vmem:[#allocation5] sm:$0xf]
        %v1448 = vld [vmem:[#allocation5 + $0x4] sm:$0xf]
        %v1449 = vld [vmem:[#allocation5 + $0x8] sm:$0xf]
        %v1450 = vld [vmem:[#allocation5 + $0xc] sm:$0xf]
        %v1451 = vld [vmem:[#allocation5 + $0x10] sm:$0xf]
        %v1452 = vld [vmem:[#allocation5 + $0x14] sm:$0xf]
        %v1453 = vld [vmem:[#allocation5 + $0x18] sm:$0xf]
        %v1454 = vld [vmem:[#allocation5 + $0x1c] sm:$0xf]
        %v1455 = vld [vmem:[#allocation5 + $0x20] sm:$0xf]
        %v1456 = vld [vmem:[#allocation5 + $0x24] sm:$0xf]
        %v1457 = vld [vmem:[#allocation5 + $0x28] sm:$0xf]
        %v1458 = vld [vmem:[#allocation5 + $0x2c] sm:$0xf]
        %v1459 = vld [vmem:[#allocation5 + $0x30] sm:$0xf]
        %v1460 = vld [vmem:[#allocation5 + $0x34] sm:$0xf]
        %v1461 = vld [vmem:[#allocation5 + $0x38] sm:$0xf]
        %v1462 = vld [vmem:[#allocation5 + $0x3c] sm:$0xf]
        %v1479 = vunpack.c.l.b16 %v1447
        %v1480 = vunpack.c.l.b16 %v1448
        %v1481 = vunpack.c.l.b16 %v1449
        %v1482 = vunpack.c.l.b16 %v1450
        %v1483 = vunpack.c.l.b16 %v1451
        %v1484 = vunpack.c.l.b16 %v1452
        %v1485 = vunpack.c.l.b16 %v1453
        %v1486 = vunpack.c.l.b16 %v1454
        %v1487 = vunpack.c.l.b16 %v1455
        %v1488 = vunpack.c.l.b16 %v1456
        %v1489 = vunpack.c.l.b16 %v1457
        %v1490 = vunpack.c.l.b16 %v1458
        %v1491 = vunpack.c.l.b16 %v1459
        %v1492 = vunpack.c.l.b16 %v1460
        %v1493 = vunpack.c.l.b16 %v1461
        %v1494 = vunpack.c.l.b16 %v1462
        %v1495 = vpack.c.b16 %v1480, %v1479
        %v1496 = vpack.c.b16 %v1482, %v1481
        %v1497 = vpack.c.b16 %v1484, %v1483
        %v1498 = vpack.c.b16 %v1486, %v1485
        %v1499 = vpack.c.b16 %v1488, %v1487
        %v1500 = vpack.c.b16 %v1490, %v1489
        %v1501 = vpack.c.b16 %v1492, %v1491
        %v1502 = vpack.c.b16 %v1494, %v1493
        %1511 = vmatpush.bf16.msra.mxu0 %v1502
        %1512 = vmatpush.bf16.msra.mxu0 %v1501
        %1513 = vmatpush.bf16.msra.mxu0 %v1500
        %1514 = vmatpush.bf16.msra.mxu0 %v1499
        %1515 = vmatpush.bf16.msra.mxu0 %v1498
        %1516 = vmatpush.bf16.msra.mxu0 %v1497
        %1517 = vmatpush.bf16.msra.mxu0 %v1496
        %1518 = vmatpush.bf16.msra.mxu0 %v1495
        %1519 = vmatmul.bf16.gmra.mxu0 %v1415
        %v1520 = vpop.f32.mrf.mxu0
        %v1521 = vadd.f32 0.0, %v1520
        %v1522 = vpop.f32.mrf.mxu0
        %v1523 = vadd.f32 0.0, %v1522
        %1524 = vmatmul.bf16.gmra.mxu0 %v1417
        %v1525 = vpop.f32.mrf.mxu0
        %v1526 = vadd.f32 0.0, %v1525
        %v1527 = vpop.f32.mrf.mxu0
        %v1528 = vadd.f32 0.0, %v1527
        %1529 = vmatmul.bf16.gmra.mxu0 %v1419
        %v1530 = vpop.f32.mrf.mxu0
        %v1531 = vadd.f32 0.0, %v1530
        %v1532 = vpop.f32.mrf.mxu0
        %v1533 = vadd.f32 0.0, %v1532
        %1534 = vmatmul.bf16.gmra.mxu0 %v1421
        %v1535 = vpop.f32.mrf.mxu0
        %v1536 = vadd.f32 0.0, %v1535
        %v1537 = vpop.f32.mrf.mxu0
        %v1538 = vadd.f32 0.0, %v1537
        %1539 = vmatmul.bf16.gmra.mxu0 %v1423
        %v1540 = vpop.f32.mrf.mxu0
        %v1541 = vadd.f32 0.0, %v1540
        %v1542 = vpop.f32.mrf.mxu0
        %v1543 = vadd.f32 0.0, %v1542
        %1544 = vmatmul.bf16.gmra.mxu0 %v1425
        %v1545 = vpop.f32.mrf.mxu0
        %v1546 = vadd.f32 0.0, %v1545
        %v1547 = vpop.f32.mrf.mxu0
        %v1548 = vadd.f32 0.0, %v1547
        %1549 = vmatmul.bf16.gmra.mxu0 %v1427
        %v1550 = vpop.f32.mrf.mxu0
        %v1551 = vadd.f32 0.0, %v1550
        %v1552 = vpop.f32.mrf.mxu0
        %v1553 = vadd.f32 0.0, %v1552
        %1554 = vmatmul.bf16.gmra.mxu0 %v1429
        %v1555 = vpop.f32.mrf.mxu0
        %v1556 = vadd.f32 0.0, %v1555
        %v1557 = vpop.f32.mrf.mxu0
        %v1558 = vadd.f32 0.0, %v1557
        %1559 = vmatmul.bf16.gmra.mxu0 %v1431
        %v1560 = vpop.f32.mrf.mxu0
        %v1561 = vadd.f32 0.0, %v1560
        %v1562 = vpop.f32.mrf.mxu0
        %v1563 = vadd.f32 0.0, %v1562
        %1564 = vmatmul.bf16.gmra.mxu0 %v1433
        %v1565 = vpop.f32.mrf.mxu0
        %v1566 = vadd.f32 0.0, %v1565
        %v1567 = vpop.f32.mrf.mxu0
        %v1568 = vadd.f32 0.0, %v1567
        %1569 = vmatmul.bf16.gmra.mxu0 %v1435
        %v1570 = vpop.f32.mrf.mxu0
        %v1571 = vadd.f32 0.0, %v1570
        %v1572 = vpop.f32.mrf.mxu0
        %v1573 = vadd.f32 0.0, %v1572
        %1574 = vmatmul.bf16.gmra.mxu0 %v1437
        %v1575 = vpop.f32.mrf.mxu0
        %v1576 = vadd.f32 0.0, %v1575
        %v1577 = vpop.f32.mrf.mxu0
        %v1578 = vadd.f32 0.0, %v1577
        %1579 = vmatmul.bf16.gmra.mxu0 %v1439
        %v1580 = vpop.f32.mrf.mxu0
        %v1581 = vadd.f32 0.0, %v1580
        %v1582 = vpop.f32.mrf.mxu0
        %v1583 = vadd.f32 0.0, %v1582
        %1584 = vmatmul.bf16.gmra.mxu0 %v1441
        %v1585 = vpop.f32.mrf.mxu0
        %v1586 = vadd.f32 0.0, %v1585
        %v1587 = vpop.f32.mrf.mxu0
        %v1588 = vadd.f32 0.0, %v1587
        %1589 = vmatmul.bf16.gmra.mxu0 %v1443
        %v1590 = vpop.f32.mrf.mxu0
        %v1591 = vadd.f32 0.0, %v1590
        %v1592 = vpop.f32.mrf.mxu0
        %v1593 = vadd.f32 0.0, %v1592
        %1594 = vmatmul.bf16.gmra.mxu0 %v1445
        %v1595 = vpop.f32.mrf.mxu0
        %v1596 = vadd.f32 0.0, %v1595
        %v1597 = vpop.f32.mrf.mxu0
        %v1598 = vadd.f32 0.0, %v1597
        %1599 = vdwg.mxu0
        %v1600 = vld [vmem:[%s2] sm:$0x1]
        %v1602 = vperm.slane %v1600, 0
        %v1604 = vmul.f32 %v1521, %v1602
        %v1605 = vmul.f32 %v1523, %v1602
        %v1606 = vmul.f32 %v1526, %v1602
        %v1607 = vmul.f32 %v1528, %v1602
        %v1608 = vmul.f32 %v1531, %v1602
        %v1609 = vmul.f32 %v1533, %v1602
        %v1610 = vmul.f32 %v1536, %v1602
        %v1611 = vmul.f32 %v1538, %v1602
        %v1612 = vmul.f32 %v1541, %v1602
        %v1613 = vmul.f32 %v1543, %v1602
        %v1614 = vmul.f32 %v1546, %v1602
        %v1615 = vmul.f32 %v1548, %v1602
        %v1616 = vmul.f32 %v1551, %v1602
        %v1617 = vmul.f32 %v1553, %v1602
        %v1618 = vmul.f32 %v1556, %v1602
        %v1619 = vmul.f32 %v1558, %v1602
        %v1620 = vmul.f32 %v1561, %v1602
        %v1621 = vmul.f32 %v1563, %v1602
        %v1622 = vmul.f32 %v1566, %v1602
        %v1623 = vmul.f32 %v1568, %v1602
        %v1624 = vmul.f32 %v1571, %v1602
        %v1625 = vmul.f32 %v1573, %v1602
        %v1626 = vmul.f32 %v1576, %v1602
        %v1627 = vmul.f32 %v1578, %v1602
        %v1628 = vmul.f32 %v1581, %v1602
        %v1629 = vmul.f32 %v1583, %v1602
        %v1630 = vmul.f32 %v1586, %v1602
        %v1631 = vmul.f32 %v1588, %v1602
        %v1632 = vmul.f32 %v1591, %v1602
        %v1633 = vmul.f32 %v1593, %v1602
        %v1634 = vmul.f32 %v1596, %v1602
        %v1635 = vmul.f32 %v1598, %v1602
        %v1636 = vld [vmem:[%s3] sm:$0x1]
        %v1638 = vperm.slane %v1636, 0
        %v1640 = vadd.f32 %v1604, %v1638
        %v1641 = vadd.f32 %v1605, %v1638
        %v1642 = vadd.f32 %v1606, %v1638
        %v1643 = vadd.f32 %v1607, %v1638
        %v1644 = vadd.f32 %v1608, %v1638
        %v1645 = vadd.f32 %v1609, %v1638
        %v1646 = vadd.f32 %v1610, %v1638
        %v1647 = vadd.f32 %v1611, %v1638
        %v1648 = vadd.f32 %v1612, %v1638
        %v1649 = vadd.f32 %v1613, %v1638
        %v1650 = vadd.f32 %v1614, %v1638
        %v1651 = vadd.f32 %v1615, %v1638
        %v1652 = vadd.f32 %v1616, %v1638
        %v1653 = vadd.f32 %v1617, %v1638
        %v1654 = vadd.f32 %v1618, %v1638
        %v1655 = vadd.f32 %v1619, %v1638
        %v1656 = vadd.f32 %v1620, %v1638
        %v1657 = vadd.f32 %v1621, %v1638
        %v1658 = vadd.f32 %v1622, %v1638
        %v1659 = vadd.f32 %v1623, %v1638
        %v1660 = vadd.f32 %v1624, %v1638
        %v1661 = vadd.f32 %v1625, %v1638
        %v1662 = vadd.f32 %v1626, %v1638
        %v1663 = vadd.f32 %v1627, %v1638
        %v1664 = vadd.f32 %v1628, %v1638
        %v1665 = vadd.f32 %v1629, %v1638
        %v1666 = vadd.f32 %v1630, %v1638
        %v1667 = vadd.f32 %v1631, %v1638
        %v1668 = vadd.f32 %v1632, %v1638
        %v1669 = vadd.f32 %v1633, %v1638
        %v1670 = vadd.f32 %v1634, %v1638
        %v1671 = vadd.f32 %v1635, %v1638
        %v1672 = vmax.f32 %v1640, 0.0
        %v1673 = vmax.f32 %v1641, 0.0
        %v1674 = vmax.f32 %v1642, 0.0
        %v1675 = vmax.f32 %v1643, 0.0
        %v1676 = vmax.f32 %v1644, 0.0
        %v1677 = vmax.f32 %v1645, 0.0
        %v1678 = vmax.f32 %v1646, 0.0
        %v1679 = vmax.f32 %v1647, 0.0
        %v1680 = vmax.f32 %v1648, 0.0
        %v1681 = vmax.f32 %v1649, 0.0
        %v1682 = vmax.f32 %v1650, 0.0
        %v1683 = vmax.f32 %v1651, 0.0
        %v1684 = vmax.f32 %v1652, 0.0
        %v1685 = vmax.f32 %v1653, 0.0
        %v1686 = vmax.f32 %v1654, 0.0
        %v1687 = vmax.f32 %v1655, 0.0
        %v1688 = vmax.f32 %v1656, 0.0
        %v1689 = vmax.f32 %v1657, 0.0
        %v1690 = vmax.f32 %v1658, 0.0
        %v1691 = vmax.f32 %v1659, 0.0
        %v1692 = vmax.f32 %v1660, 0.0
        %v1693 = vmax.f32 %v1661, 0.0
        %v1694 = vmax.f32 %v1662, 0.0
        %v1695 = vmax.f32 %v1663, 0.0
        %v1696 = vmax.f32 %v1664, 0.0
        %v1697 = vmax.f32 %v1665, 0.0
        %v1698 = vmax.f32 %v1666, 0.0
        %v1699 = vmax.f32 %v1667, 0.0
        %v1700 = vmax.f32 %v1668, 0.0
        %v1701 = vmax.f32 %v1669, 0.0
        %v1702 = vmax.f32 %v1670, 0.0
        %v1703 = vmax.f32 %v1671, 0.0
        %v1736 = vrot.slane %v1672, 2
        %v1737 = vrot.slane %v1672, 4
        %v1738 = vrot.slane %v1672, 6
        %v1739 = vrot.slane %v1673, 2
        %v1740 = vrot.slane %v1673, 4
        %v1741 = vrot.slane %v1673, 6
        %v1742 = vrot.slane %v1674, 2
        %v1743 = vrot.slane %v1674, 4
        %v1744 = vrot.slane %v1674, 6
        %v1745 = vrot.slane %v1675, 2
        %v1746 = vrot.slane %v1675, 4
        %v1747 = vrot.slane %v1675, 6
        %v1748 = vrot.slane %v1676, 2
        %v1749 = vrot.slane %v1676, 4
        %v1750 = vrot.slane %v1676, 6
        %v1751 = vrot.slane %v1677, 2
        %v1752 = vrot.slane %v1677, 4
        %v1753 = vrot.slane %v1677, 6
        %v1754 = vrot.slane %v1678, 2
        %v1755 = vrot.slane %v1678, 4
        %v1756 = vrot.slane %v1678, 6
        %v1757 = vrot.slane %v1679, 2
        %v1758 = vrot.slane %v1679, 4
        %v1759 = vrot.slane %v1679, 6
        %v1760 = vrot.slane %v1680, 2
        %v1761 = vrot.slane %v1680, 4
        %v1762 = vrot.slane %v1680, 6
        %v1763 = vrot.slane %v1681, 2
        %v1764 = vrot.slane %v1681, 4
        %v1765 = vrot.slane %v1681, 6
        %v1766 = vrot.slane %v1682, 2
        %v1767 = vrot.slane %v1682, 4
        %v1768 = vrot.slane %v1682, 6
        %v1769 = vrot.slane %v1683, 2
        %v1770 = vrot.slane %v1683, 4
        %v1771 = vrot.slane %v1683, 6
        %v1772 = vrot.slane %v1684, 2
        %v1773 = vrot.slane %v1684, 4
        %v1774 = vrot.slane %v1684, 6
        %v1775 = vrot.slane %v1685, 2
        %v1776 = vrot.slane %v1685, 4
        %v1777 = vrot.slane %v1685, 6
        %v1778 = vrot.slane %v1686, 2
        %v1779 = vrot.slane %v1686, 4
        %v1780 = vrot.slane %v1686, 6
        %v1781 = vrot.slane %v1687, 2
        %v1782 = vrot.slane %v1687, 4
        %v1783 = vrot.slane %v1687, 6
        %v1784 = vrot.slane %v1688, 2
        %v1785 = vrot.slane %v1688, 4
        %v1786 = vrot.slane %v1688, 6
        %v1787 = vrot.slane %v1689, 2
        %v1788 = vrot.slane %v1689, 4
        %v1789 = vrot.slane %v1689, 6
        %v1790 = vrot.slane %v1690, 2
        %v1791 = vrot.slane %v1690, 4
        %v1792 = vrot.slane %v1690, 6
        %v1793 = vrot.slane %v1691, 2
        %v1794 = vrot.slane %v1691, 4
        %v1795 = vrot.slane %v1691, 6
        %v1796 = vrot.slane %v1692, 2
        %v1797 = vrot.slane %v1692, 4
        %v1798 = vrot.slane %v1692, 6
        %v1799 = vrot.slane %v1693, 2
        %v1800 = vrot.slane %v1693, 4
        %v1801 = vrot.slane %v1693, 6
        %v1802 = vrot.slane %v1694, 2
        %v1803 = vrot.slane %v1694, 4
        %v1804 = vrot.slane %v1694, 6
        %v1805 = vrot.slane %v1695, 2
        %v1806 = vrot.slane %v1695, 4
        %v1807 = vrot.slane %v1695, 6
        %v1808 = vrot.slane %v1696, 2
        %v1809 = vrot.slane %v1696, 4
        %v1810 = vrot.slane %v1696, 6
        %v1811 = vrot.slane %v1697, 2
        %v1812 = vrot.slane %v1697, 4
        %v1813 = vrot.slane %v1697, 6
        %v1814 = vrot.slane %v1698, 2
        %v1815 = vrot.slane %v1698, 4
        %v1816 = vrot.slane %v1698, 6
        %v1817 = vrot.slane %v1699, 2
        %v1818 = vrot.slane %v1699, 4
        %v1819 = vrot.slane %v1699, 6
        %v1820 = vrot.slane %v1700, 2
        %v1821 = vrot.slane %v1700, 4
        %v1822 = vrot.slane %v1700, 6
        %v1823 = vrot.slane %v1701, 2
        %v1824 = vrot.slane %v1701, 4
        %v1825 = vrot.slane %v1701, 6
        %v1826 = vrot.slane %v1702, 2
        %v1827 = vrot.slane %v1702, 4
        %v1828 = vrot.slane %v1702, 6
        %v1829 = vrot.slane %v1703, 2
        %v1830 = vrot.slane %v1703, 4
        %v1831 = vrot.slane %v1703, 6
        %vm1928 = vcmask 1041408
        %v1929 = vsel %vm1928, %v1672, -inf
        %v1930 = vrot.slane %v1929, 4
        %v1931 = vmax.f32 %v1929, %v1930
        %v1932 = vrot.slane %v1931, 2
        %v1933 = vmax.f32 %v1931, %v1932
        %v1934 = vrot.slane %v1933, 1
        %v1935 = vmax.f32 %v1933, %v1934
        %v1936 = vsel %vm1928, %v1736, -inf
        %v1937 = vrot.slane %v1936, 4
        %v1938 = vmax.f32 %v1936, %v1937
        %v1939 = vrot.slane %v1938, 2
        %v1940 = vmax.f32 %v1938, %v1939
        %v1941 = vrot.slane %v1940, 1
        %v1942 = vmax.f32 %v1940, %v1941
        %v1943 = vsel %vm1928, %v1737, -inf
        %v1944 = vrot.slane %v1943, 4
        %v1945 = vmax.f32 %v1943, %v1944
        %v1946 = vrot.slane %v1945, 2
        %v1947 = vmax.f32 %v1945, %v1946
        %v1948 = vrot.slane %v1947, 1
        %v1949 = vmax.f32 %v1947, %v1948
        %v1950 = vsel %vm1928, %v1738, -inf
        %v1951 = vrot.slane %v1950, 4
        %v1952 = vmax.f32 %v1950, %v1951
        %v1953 = vrot.slane %v1952, 2
        %v1954 = vmax.f32 %v1952, %v1953
        %v1955 = vrot.slane %v1954, 1
        %v1956 = vmax.f32 %v1954, %v1955
        %v1957 = vsel %vm1928, %v1673, -inf
        %v1958 = vrot.slane %v1957, 4
        %v1959 = vmax.f32 %v1957, %v1958
        %v1960 = vrot.slane %v1959, 2
        %v1961 = vmax.f32 %v1959, %v1960
        %v1962 = vrot.slane %v1961, 1
        %v1963 = vmax.f32 %v1961, %v1962
        %v1964 = vsel %vm1928, %v1739, -inf
        %v1965 = vrot.slane %v1964, 4
        %v1966 = vmax.f32 %v1964, %v1965
        %v1967 = vrot.slane %v1966, 2
        %v1968 = vmax.f32 %v1966, %v1967
        %v1969 = vrot.slane %v1968, 1
        %v1970 = vmax.f32 %v1968, %v1969
        %v1971 = vsel %vm1928, %v1740, -inf
        %v1972 = vrot.slane %v1971, 4
        %v1973 = vmax.f32 %v1971, %v1972
        %v1974 = vrot.slane %v1973, 2
        %v1975 = vmax.f32 %v1973, %v1974
        %v1976 = vrot.slane %v1975, 1
        %v1977 = vmax.f32 %v1975, %v1976
        %v1978 = vsel %vm1928, %v1741, -inf
        %v1979 = vrot.slane %v1978, 4
        %v1980 = vmax.f32 %v1978, %v1979
        %v1981 = vrot.slane %v1980, 2
        %v1982 = vmax.f32 %v1980, %v1981
        %v1983 = vrot.slane %v1982, 1
        %v1984 = vmax.f32 %v1982, %v1983
        %v1985 = vsel %vm1928, %v1674, -inf
        %v1986 = vrot.slane %v1985, 4
        %v1987 = vmax.f32 %v1985, %v1986
        %v1988 = vrot.slane %v1987, 2
        %v1989 = vmax.f32 %v1987, %v1988
        %v1990 = vrot.slane %v1989, 1
        %v1991 = vmax.f32 %v1989, %v1990
        %v1992 = vsel %vm1928, %v1742, -inf
        %v1993 = vrot.slane %v1992, 4
        %v1994 = vmax.f32 %v1992, %v1993
        %v1995 = vrot.slane %v1994, 2
        %v1996 = vmax.f32 %v1994, %v1995
        %v1997 = vrot.slane %v1996, 1
        %v1998 = vmax.f32 %v1996, %v1997
        %v1999 = vsel %vm1928, %v1743, -inf
        %v2000 = vrot.slane %v1999, 4
        %v2001 = vmax.f32 %v1999, %v2000
        %v2002 = vrot.slane %v2001, 2
        %v2003 = vmax.f32 %v2001, %v2002
        %v2004 = vrot.slane %v2003, 1
        %v2005 = vmax.f32 %v2003, %v2004
        %v2006 = vsel %vm1928, %v1744, -inf
        %v2007 = vrot.slane %v2006, 4
        %v2008 = vmax.f32 %v2006, %v2007
        %v2009 = vrot.slane %v2008, 2
        %v2010 = vmax.f32 %v2008, %v2009
        %v2011 = vrot.slane %v2010, 1
        %v2012 = vmax.f32 %v2010, %v2011
        %v2013 = vsel %vm1928, %v1675, -inf
        %v2014 = vrot.slane %v2013, 4
        %v2015 = vmax.f32 %v2013, %v2014
        %v2016 = vrot.slane %v2015, 2
        %v2017 = vmax.f32 %v2015, %v2016
        %v2018 = vrot.slane %v2017, 1
        %v2019 = vmax.f32 %v2017, %v2018
        %v2020 = vsel %vm1928, %v1745, -inf
        %v2021 = vrot.slane %v2020, 4
        %v2022 = vmax.f32 %v2020, %v2021
        %v2023 = vrot.slane %v2022, 2
        %v2024 = vmax.f32 %v2022, %v2023
        %v2025 = vrot.slane %v2024, 1
        %v2026 = vmax.f32 %v2024, %v2025
        %v2027 = vsel %vm1928, %v1746, -inf
        %v2028 = vrot.slane %v2027, 4
        %v2029 = vmax.f32 %v2027, %v2028
        %v2030 = vrot.slane %v2029, 2
        %v2031 = vmax.f32 %v2029, %v2030
        %v2032 = vrot.slane %v2031, 1
        %v2033 = vmax.f32 %v2031, %v2032
        %v2034 = vsel %vm1928, %v1747, -inf
        %v2035 = vrot.slane %v2034, 4
        %v2036 = vmax.f32 %v2034, %v2035
        %v2037 = vrot.slane %v2036, 2
        %v2038 = vmax.f32 %v2036, %v2037
        %v2039 = vrot.slane %v2038, 1
        %v2040 = vmax.f32 %v2038, %v2039
        %v2041 = vsel %vm1928, %v1676, -inf
        %v2042 = vrot.slane %v2041, 4
        %v2043 = vmax.f32 %v2041, %v2042
        %v2044 = vrot.slane %v2043, 2
        %v2045 = vmax.f32 %v2043, %v2044
        %v2046 = vrot.slane %v2045, 1
        %v2047 = vmax.f32 %v2045, %v2046
        %v2048 = vsel %vm1928, %v1748, -inf
        %v2049 = vrot.slane %v2048, 4
        %v2050 = vmax.f32 %v2048, %v2049
        %v2051 = vrot.slane %v2050, 2
        %v2052 = vmax.f32 %v2050, %v2051
        %v2053 = vrot.slane %v2052, 1
        %v2054 = vmax.f32 %v2052, %v2053
        %v2055 = vsel %vm1928, %v1749, -inf
        %v2056 = vrot.slane %v2055, 4
        %v2057 = vmax.f32 %v2055, %v2056
        %v2058 = vrot.slane %v2057, 2
        %v2059 = vmax.f32 %v2057, %v2058
        %v2060 = vrot.slane %v2059, 1
        %v2061 = vmax.f32 %v2059, %v2060
        %v2062 = vsel %vm1928, %v1750, -inf
        %v2063 = vrot.slane %v2062, 4
        %v2064 = vmax.f32 %v2062, %v2063
        %v2065 = vrot.slane %v2064, 2
        %v2066 = vmax.f32 %v2064, %v2065
        %v2067 = vrot.slane %v2066, 1
        %v2068 = vmax.f32 %v2066, %v2067
        %v2069 = vsel %vm1928, %v1677, -inf
        %v2070 = vrot.slane %v2069, 4
        %v2071 = vmax.f32 %v2069, %v2070
        %v2072 = vrot.slane %v2071, 2
        %v2073 = vmax.f32 %v2071, %v2072
        %v2074 = vrot.slane %v2073, 1
        %v2075 = vmax.f32 %v2073, %v2074
        %v2076 = vsel %vm1928, %v1751, -inf
        %v2077 = vrot.slane %v2076, 4
        %v2078 = vmax.f32 %v2076, %v2077
        %v2079 = vrot.slane %v2078, 2
        %v2080 = vmax.f32 %v2078, %v2079
        %v2081 = vrot.slane %v2080, 1
        %v2082 = vmax.f32 %v2080, %v2081
        %v2083 = vsel %vm1928, %v1752, -inf
        %v2084 = vrot.slane %v2083, 4
        %v2085 = vmax.f32 %v2083, %v2084
        %v2086 = vrot.slane %v2085, 2
        %v2087 = vmax.f32 %v2085, %v2086
        %v2088 = vrot.slane %v2087, 1
        %v2089 = vmax.f32 %v2087, %v2088
        %v2090 = vsel %vm1928, %v1753, -inf
        %v2091 = vrot.slane %v2090, 4
        %v2092 = vmax.f32 %v2090, %v2091
        %v2093 = vrot.slane %v2092, 2
        %v2094 = vmax.f32 %v2092, %v2093
        %v2095 = vrot.slane %v2094, 1
        %v2096 = vmax.f32 %v2094, %v2095
        %v2097 = vsel %vm1928, %v1678, -inf
        %v2098 = vrot.slane %v2097, 4
        %v2099 = vmax.f32 %v2097, %v2098
        %v2100 = vrot.slane %v2099, 2
        %v2101 = vmax.f32 %v2099, %v2100
        %v2102 = vrot.slane %v2101, 1
        %v2103 = vmax.f32 %v2101, %v2102
        %v2104 = vsel %vm1928, %v1754, -inf
        %v2105 = vrot.slane %v2104, 4
        %v2106 = vmax.f32 %v2104, %v2105
        %v2107 = vrot.slane %v2106, 2
        %v2108 = vmax.f32 %v2106, %v2107
        %v2109 = vrot.slane %v2108, 1
        %v2110 = vmax.f32 %v2108, %v2109
        %v2111 = vsel %vm1928, %v1755, -inf
        %v2112 = vrot.slane %v2111, 4
        %v2113 = vmax.f32 %v2111, %v2112
        %v2114 = vrot.slane %v2113, 2
        %v2115 = vmax.f32 %v2113, %v2114
        %v2116 = vrot.slane %v2115, 1
        %v2117 = vmax.f32 %v2115, %v2116
        %v2118 = vsel %vm1928, %v1756, -inf
        %v2119 = vrot.slane %v2118, 4
        %v2120 = vmax.f32 %v2118, %v2119
        %v2121 = vrot.slane %v2120, 2
        %v2122 = vmax.f32 %v2120, %v2121
        %v2123 = vrot.slane %v2122, 1
        %v2124 = vmax.f32 %v2122, %v2123
        %v2125 = vsel %vm1928, %v1679, -inf
        %v2126 = vrot.slane %v2125, 4
        %v2127 = vmax.f32 %v2125, %v2126
        %v2128 = vrot.slane %v2127, 2
        %v2129 = vmax.f32 %v2127, %v2128
        %v2130 = vrot.slane %v2129, 1
        %v2131 = vmax.f32 %v2129, %v2130
        %v2132 = vsel %vm1928, %v1757, -inf
        %v2133 = vrot.slane %v2132, 4
        %v2134 = vmax.f32 %v2132, %v2133
        %v2135 = vrot.slane %v2134, 2
        %v2136 = vmax.f32 %v2134, %v2135
        %v2137 = vrot.slane %v2136, 1
        %v2138 = vmax.f32 %v2136, %v2137
        %v2139 = vsel %vm1928, %v1758, -inf
        %v2140 = vrot.slane %v2139, 4
        %v2141 = vmax.f32 %v2139, %v2140
        %v2142 = vrot.slane %v2141, 2
        %v2143 = vmax.f32 %v2141, %v2142
        %v2144 = vrot.slane %v2143, 1
        %v2145 = vmax.f32 %v2143, %v2144
        %v2146 = vsel %vm1928, %v1759, -inf
        %v2147 = vrot.slane %v2146, 4
        %v2148 = vmax.f32 %v2146, %v2147
        %v2149 = vrot.slane %v2148, 2
        %v2150 = vmax.f32 %v2148, %v2149
        %v2151 = vrot.slane %v2150, 1
        %v2152 = vmax.f32 %v2150, %v2151
        %v2153 = vsel %vm1928, %v1680, -inf
        %v2154 = vrot.slane %v2153, 4
        %v2155 = vmax.f32 %v2153, %v2154
        %v2156 = vrot.slane %v2155, 2
        %v2157 = vmax.f32 %v2155, %v2156
        %v2158 = vrot.slane %v2157, 1
        %v2159 = vmax.f32 %v2157, %v2158
        %v2160 = vsel %vm1928, %v1760, -inf
        %v2161 = vrot.slane %v2160, 4
        %v2162 = vmax.f32 %v2160, %v2161
        %v2163 = vrot.slane %v2162, 2
        %v2164 = vmax.f32 %v2162, %v2163
        %v2165 = vrot.slane %v2164, 1
        %v2166 = vmax.f32 %v2164, %v2165
        %v2167 = vsel %vm1928, %v1761, -inf
        %v2168 = vrot.slane %v2167, 4
        %v2169 = vmax.f32 %v2167, %v2168
        %v2170 = vrot.slane %v2169, 2
        %v2171 = vmax.f32 %v2169, %v2170
        %v2172 = vrot.slane %v2171, 1
        %v2173 = vmax.f32 %v2171, %v2172
        %v2174 = vsel %vm1928, %v1762, -inf
        %v2175 = vrot.slane %v2174, 4
        %v2176 = vmax.f32 %v2174, %v2175
        %v2177 = vrot.slane %v2176, 2
        %v2178 = vmax.f32 %v2176, %v2177
        %v2179 = vrot.slane %v2178, 1
        %v2180 = vmax.f32 %v2178, %v2179
        %v2181 = vsel %vm1928, %v1681, -inf
        %v2182 = vrot.slane %v2181, 4
        %v2183 = vmax.f32 %v2181, %v2182
        %v2184 = vrot.slane %v2183, 2
        %v2185 = vmax.f32 %v2183, %v2184
        %v2186 = vrot.slane %v2185, 1
        %v2187 = vmax.f32 %v2185, %v2186
        %v2188 = vsel %vm1928, %v1763, -inf
        %v2189 = vrot.slane %v2188, 4
        %v2190 = vmax.f32 %v2188, %v2189
        %v2191 = vrot.slane %v2190, 2
        %v2192 = vmax.f32 %v2190, %v2191
        %v2193 = vrot.slane %v2192, 1
        %v2194 = vmax.f32 %v2192, %v2193
        %v2195 = vsel %vm1928, %v1764, -inf
        %v2196 = vrot.slane %v2195, 4
        %v2197 = vmax.f32 %v2195, %v2196
        %v2198 = vrot.slane %v2197, 2
        %v2199 = vmax.f32 %v2197, %v2198
        %v2200 = vrot.slane %v2199, 1
        %v2201 = vmax.f32 %v2199, %v2200
        %v2202 = vsel %vm1928, %v1765, -inf
        %v2203 = vrot.slane %v2202, 4
        %v2204 = vmax.f32 %v2202, %v2203
        %v2205 = vrot.slane %v2204, 2
        %v2206 = vmax.f32 %v2204, %v2205
        %v2207 = vrot.slane %v2206, 1
        %v2208 = vmax.f32 %v2206, %v2207
        %v2209 = vsel %vm1928, %v1682, -inf
        %v2210 = vrot.slane %v2209, 4
        %v2211 = vmax.f32 %v2209, %v2210
        %v2212 = vrot.slane %v2211, 2
        %v2213 = vmax.f32 %v2211, %v2212
        %v2214 = vrot.slane %v2213, 1
        %v2215 = vmax.f32 %v2213, %v2214
        %v2216 = vsel %vm1928, %v1766, -inf
        %v2217 = vrot.slane %v2216, 4
        %v2218 = vmax.f32 %v2216, %v2217
        %v2219 = vrot.slane %v2218, 2
        %v2220 = vmax.f32 %v2218, %v2219
        %v2221 = vrot.slane %v2220, 1
        %v2222 = vmax.f32 %v2220, %v2221
        %v2223 = vsel %vm1928, %v1767, -inf
        %v2224 = vrot.slane %v2223, 4
        %v2225 = vmax.f32 %v2223, %v2224
        %v2226 = vrot.slane %v2225, 2
        %v2227 = vmax.f32 %v2225, %v2226
        %v2228 = vrot.slane %v2227, 1
        %v2229 = vmax.f32 %v2227, %v2228
        %v2230 = vsel %vm1928, %v1768, -inf
        %v2231 = vrot.slane %v2230, 4
        %v2232 = vmax.f32 %v2230, %v2231
        %v2233 = vrot.slane %v2232, 2
        %v2234 = vmax.f32 %v2232, %v2233
        %v2235 = vrot.slane %v2234, 1
        %v2236 = vmax.f32 %v2234, %v2235
        %v2237 = vsel %vm1928, %v1683, -inf
        %v2238 = vrot.slane %v2237, 4
        %v2239 = vmax.f32 %v2237, %v2238
        %v2240 = vrot.slane %v2239, 2
        %v2241 = vmax.f32 %v2239, %v2240
        %v2242 = vrot.slane %v2241, 1
        %v2243 = vmax.f32 %v2241, %v2242
        %v2244 = vsel %vm1928, %v1769, -inf
        %v2245 = vrot.slane %v2244, 4
        %v2246 = vmax.f32 %v2244, %v2245
        %v2247 = vrot.slane %v2246, 2
        %v2248 = vmax.f32 %v2246, %v2247
        %v2249 = vrot.slane %v2248, 1
        %v2250 = vmax.f32 %v2248, %v2249
        %v2251 = vsel %vm1928, %v1770, -inf
        %v2252 = vrot.slane %v2251, 4
        %v2253 = vmax.f32 %v2251, %v2252
        %v2254 = vrot.slane %v2253, 2
        %v2255 = vmax.f32 %v2253, %v2254
        %v2256 = vrot.slane %v2255, 1
        %v2257 = vmax.f32 %v2255, %v2256
        %v2258 = vsel %vm1928, %v1771, -inf
        %v2259 = vrot.slane %v2258, 4
        %v2260 = vmax.f32 %v2258, %v2259
        %v2261 = vrot.slane %v2260, 2
        %v2262 = vmax.f32 %v2260, %v2261
        %v2263 = vrot.slane %v2262, 1
        %v2264 = vmax.f32 %v2262, %v2263
        %v2265 = vsel %vm1928, %v1684, -inf
        %v2266 = vrot.slane %v2265, 4
        %v2267 = vmax.f32 %v2265, %v2266
        %v2268 = vrot.slane %v2267, 2
        %v2269 = vmax.f32 %v2267, %v2268
        %v2270 = vrot.slane %v2269, 1
        %v2271 = vmax.f32 %v2269, %v2270
        %v2272 = vsel %vm1928, %v1772, -inf
        %v2273 = vrot.slane %v2272, 4
        %v2274 = vmax.f32 %v2272, %v2273
        %v2275 = vrot.slane %v2274, 2
        %v2276 = vmax.f32 %v2274, %v2275
        %v2277 = vrot.slane %v2276, 1
        %v2278 = vmax.f32 %v2276, %v2277
        %v2279 = vsel %vm1928, %v1773, -inf
        %v2280 = vrot.slane %v2279, 4
        %v2281 = vmax.f32 %v2279, %v2280
        %v2282 = vrot.slane %v2281, 2
        %v2283 = vmax.f32 %v2281, %v2282
        %v2284 = vrot.slane %v2283, 1
        %v2285 = vmax.f32 %v2283, %v2284
        %v2286 = vsel %vm1928, %v1774, -inf
        %v2287 = vrot.slane %v2286, 4
        %v2288 = vmax.f32 %v2286, %v2287
        %v2289 = vrot.slane %v2288, 2
        %v2290 = vmax.f32 %v2288, %v2289
        %v2291 = vrot.slane %v2290, 1
        %v2292 = vmax.f32 %v2290, %v2291
        %v2293 = vsel %vm1928, %v1685, -inf
        %v2294 = vrot.slane %v2293, 4
        %v2295 = vmax.f32 %v2293, %v2294
        %v2296 = vrot.slane %v2295, 2
        %v2297 = vmax.f32 %v2295, %v2296
        %v2298 = vrot.slane %v2297, 1
        %v2299 = vmax.f32 %v2297, %v2298
        %v2300 = vsel %vm1928, %v1775, -inf
        %v2301 = vrot.slane %v2300, 4
        %v2302 = vmax.f32 %v2300, %v2301
        %v2303 = vrot.slane %v2302, 2
        %v2304 = vmax.f32 %v2302, %v2303
        %v2305 = vrot.slane %v2304, 1
        %v2306 = vmax.f32 %v2304, %v2305
        %v2307 = vsel %vm1928, %v1776, -inf
        %v2308 = vrot.slane %v2307, 4
        %v2309 = vmax.f32 %v2307, %v2308
        %v2310 = vrot.slane %v2309, 2
        %v2311 = vmax.f32 %v2309, %v2310
        %v2312 = vrot.slane %v2311, 1
        %v2313 = vmax.f32 %v2311, %v2312
        %v2314 = vsel %vm1928, %v1777, -inf
        %v2315 = vrot.slane %v2314, 4
        %v2316 = vmax.f32 %v2314, %v2315
        %v2317 = vrot.slane %v2316, 2
        %v2318 = vmax.f32 %v2316, %v2317
        %v2319 = vrot.slane %v2318, 1
        %v2320 = vmax.f32 %v2318, %v2319
        %v2321 = vsel %vm1928, %v1686, -inf
        %v2322 = vrot.slane %v2321, 4
        %v2323 = vmax.f32 %v2321, %v2322
        %v2324 = vrot.slane %v2323, 2
        %v2325 = vmax.f32 %v2323, %v2324
        %v2326 = vrot.slane %v2325, 1
        %v2327 = vmax.f32 %v2325, %v2326
        %v2328 = vsel %vm1928, %v1778, -inf
        %v2329 = vrot.slane %v2328, 4
        %v2330 = vmax.f32 %v2328, %v2329
        %v2331 = vrot.slane %v2330, 2
        %v2332 = vmax.f32 %v2330, %v2331
        %v2333 = vrot.slane %v2332, 1
        %v2334 = vmax.f32 %v2332, %v2333
        %v2335 = vsel %vm1928, %v1779, -inf
        %v2336 = vrot.slane %v2335, 4
        %v2337 = vmax.f32 %v2335, %v2336
        %v2338 = vrot.slane %v2337, 2
        %v2339 = vmax.f32 %v2337, %v2338
        %v2340 = vrot.slane %v2339, 1
        %v2341 = vmax.f32 %v2339, %v2340
        %v2342 = vsel %vm1928, %v1780, -inf
        %v2343 = vrot.slane %v2342, 4
        %v2344 = vmax.f32 %v2342, %v2343
        %v2345 = vrot.slane %v2344, 2
        %v2346 = vmax.f32 %v2344, %v2345
        %v2347 = vrot.slane %v2346, 1
        %v2348 = vmax.f32 %v2346, %v2347
        %v2349 = vsel %vm1928, %v1687, -inf
        %v2350 = vrot.slane %v2349, 4
        %v2351 = vmax.f32 %v2349, %v2350
        %v2352 = vrot.slane %v2351, 2
        %v2353 = vmax.f32 %v2351, %v2352
        %v2354 = vrot.slane %v2353, 1
        %v2355 = vmax.f32 %v2353, %v2354
        %v2356 = vsel %vm1928, %v1781, -inf
        %v2357 = vrot.slane %v2356, 4
        %v2358 = vmax.f32 %v2356, %v2357
        %v2359 = vrot.slane %v2358, 2
        %v2360 = vmax.f32 %v2358, %v2359
        %v2361 = vrot.slane %v2360, 1
        %v2362 = vmax.f32 %v2360, %v2361
        %v2363 = vsel %vm1928, %v1782, -inf
        %v2364 = vrot.slane %v2363, 4
        %v2365 = vmax.f32 %v2363, %v2364
        %v2366 = vrot.slane %v2365, 2
        %v2367 = vmax.f32 %v2365, %v2366
        %v2368 = vrot.slane %v2367, 1
        %v2369 = vmax.f32 %v2367, %v2368
        %v2370 = vsel %vm1928, %v1783, -inf
        %v2371 = vrot.slane %v2370, 4
        %v2372 = vmax.f32 %v2370, %v2371
        %v2373 = vrot.slane %v2372, 2
        %v2374 = vmax.f32 %v2372, %v2373
        %v2375 = vrot.slane %v2374, 1
        %v2376 = vmax.f32 %v2374, %v2375
        %v2377 = vsel %vm1928, %v1688, -inf
        %v2378 = vrot.slane %v2377, 4
        %v2379 = vmax.f32 %v2377, %v2378
        %v2380 = vrot.slane %v2379, 2
        %v2381 = vmax.f32 %v2379, %v2380
        %v2382 = vrot.slane %v2381, 1
        %v2383 = vmax.f32 %v2381, %v2382
        %v2384 = vsel %vm1928, %v1784, -inf
        %v2385 = vrot.slane %v2384, 4
        %v2386 = vmax.f32 %v2384, %v2385
        %v2387 = vrot.slane %v2386, 2
        %v2388 = vmax.f32 %v2386, %v2387
        %v2389 = vrot.slane %v2388, 1
        %v2390 = vmax.f32 %v2388, %v2389
        %v2391 = vsel %vm1928, %v1785, -inf
        %v2392 = vrot.slane %v2391, 4
        %v2393 = vmax.f32 %v2391, %v2392
        %v2394 = vrot.slane %v2393, 2
        %v2395 = vmax.f32 %v2393, %v2394
        %v2396 = vrot.slane %v2395, 1
        %v2397 = vmax.f32 %v2395, %v2396
        %v2398 = vsel %vm1928, %v1786, -inf
        %v2399 = vrot.slane %v2398, 4
        %v2400 = vmax.f32 %v2398, %v2399
        %v2401 = vrot.slane %v2400, 2
        %v2402 = vmax.f32 %v2400, %v2401
        %v2403 = vrot.slane %v2402, 1
        %v2404 = vmax.f32 %v2402, %v2403
        %v2405 = vsel %vm1928, %v1689, -inf
        %v2406 = vrot.slane %v2405, 4
        %v2407 = vmax.f32 %v2405, %v2406
        %v2408 = vrot.slane %v2407, 2
        %v2409 = vmax.f32 %v2407, %v2408
        %v2410 = vrot.slane %v2409, 1
        %v2411 = vmax.f32 %v2409, %v2410
        %v2412 = vsel %vm1928, %v1787, -inf
        %v2413 = vrot.slane %v2412, 4
        %v2414 = vmax.f32 %v2412, %v2413
        %v2415 = vrot.slane %v2414, 2
        %v2416 = vmax.f32 %v2414, %v2415
        %v2417 = vrot.slane %v2416, 1
        %v2418 = vmax.f32 %v2416, %v2417
        %v2419 = vsel %vm1928, %v1788, -inf
        %v2420 = vrot.slane %v2419, 4
        %v2421 = vmax.f32 %v2419, %v2420
        %v2422 = vrot.slane %v2421, 2
        %v2423 = vmax.f32 %v2421, %v2422
        %v2424 = vrot.slane %v2423, 1
        %v2425 = vmax.f32 %v2423, %v2424
        %v2426 = vsel %vm1928, %v1789, -inf
        %v2427 = vrot.slane %v2426, 4
        %v2428 = vmax.f32 %v2426, %v2427
        %v2429 = vrot.slane %v2428, 2
        %v2430 = vmax.f32 %v2428, %v2429
        %v2431 = vrot.slane %v2430, 1
        %v2432 = vmax.f32 %v2430, %v2431
        %v2433 = vsel %vm1928, %v1690, -inf
        %v2434 = vrot.slane %v2433, 4
        %v2435 = vmax.f32 %v2433, %v2434
        %v2436 = vrot.slane %v2435, 2
        %v2437 = vmax.f32 %v2435, %v2436
        %v2438 = vrot.slane %v2437, 1
        %v2439 = vmax.f32 %v2437, %v2438
        %v2440 = vsel %vm1928, %v1790, -inf
        %v2441 = vrot.slane %v2440, 4
        %v2442 = vmax.f32 %v2440, %v2441
        %v2443 = vrot.slane %v2442, 2
        %v2444 = vmax.f32 %v2442, %v2443
        %v2445 = vrot.slane %v2444, 1
        %v2446 = vmax.f32 %v2444, %v2445
        %v2447 = vsel %vm1928, %v1791, -inf
        %v2448 = vrot.slane %v2447, 4
        %v2449 = vmax.f32 %v2447, %v2448
        %v2450 = vrot.slane %v2449, 2
        %v2451 = vmax.f32 %v2449, %v2450
        %v2452 = vrot.slane %v2451, 1
        %v2453 = vmax.f32 %v2451, %v2452
        %v2454 = vsel %vm1928, %v1792, -inf
        %v2455 = vrot.slane %v2454, 4
        %v2456 = vmax.f32 %v2454, %v2455
        %v2457 = vrot.slane %v2456, 2
        %v2458 = vmax.f32 %v2456, %v2457
        %v2459 = vrot.slane %v2458, 1
        %v2460 = vmax.f32 %v2458, %v2459
        %v2461 = vsel %vm1928, %v1691, -inf
        %v2462 = vrot.slane %v2461, 4
        %v2463 = vmax.f32 %v2461, %v2462
        %v2464 = vrot.slane %v2463, 2
        %v2465 = vmax.f32 %v2463, %v2464
        %v2466 = vrot.slane %v2465, 1
        %v2467 = vmax.f32 %v2465, %v2466
        %v2468 = vsel %vm1928, %v1793, -inf
        %v2469 = vrot.slane %v2468, 4
        %v2470 = vmax.f32 %v2468, %v2469
        %v2471 = vrot.slane %v2470, 2
        %v2472 = vmax.f32 %v2470, %v2471
        %v2473 = vrot.slane %v2472, 1
        %v2474 = vmax.f32 %v2472, %v2473
        %v2475 = vsel %vm1928, %v1794, -inf
        %v2476 = vrot.slane %v2475, 4
        %v2477 = vmax.f32 %v2475, %v2476
        %v2478 = vrot.slane %v2477, 2
        %v2479 = vmax.f32 %v2477, %v2478
        %v2480 = vrot.slane %v2479, 1
        %v2481 = vmax.f32 %v2479, %v2480
        %v2482 = vsel %vm1928, %v1795, -inf
        %v2483 = vrot.slane %v2482, 4
        %v2484 = vmax.f32 %v2482, %v2483
        %v2485 = vrot.slane %v2484, 2
        %v2486 = vmax.f32 %v2484, %v2485
        %v2487 = vrot.slane %v2486, 1
        %v2488 = vmax.f32 %v2486, %v2487
        %v2489 = vsel %vm1928, %v1692, -inf
        %v2490 = vrot.slane %v2489, 4
        %v2491 = vmax.f32 %v2489, %v2490
        %v2492 = vrot.slane %v2491, 2
        %v2493 = vmax.f32 %v2491, %v2492
        %v2494 = vrot.slane %v2493, 1
        %v2495 = vmax.f32 %v2493, %v2494
        %v2496 = vsel %vm1928, %v1796, -inf
        %v2497 = vrot.slane %v2496, 4
        %v2498 = vmax.f32 %v2496, %v2497
        %v2499 = vrot.slane %v2498, 2
        %v2500 = vmax.f32 %v2498, %v2499
        %v2501 = vrot.slane %v2500, 1
        %v2502 = vmax.f32 %v2500, %v2501
        %v2503 = vsel %vm1928, %v1797, -inf
        %v2504 = vrot.slane %v2503, 4
        %v2505 = vmax.f32 %v2503, %v2504
        %v2506 = vrot.slane %v2505, 2
        %v2507 = vmax.f32 %v2505, %v2506
        %v2508 = vrot.slane %v2507, 1
        %v2509 = vmax.f32 %v2507, %v2508
        %v2510 = vsel %vm1928, %v1798, -inf
        %v2511 = vrot.slane %v2510, 4
        %v2512 = vmax.f32 %v2510, %v2511
        %v2513 = vrot.slane %v2512, 2
        %v2514 = vmax.f32 %v2512, %v2513
        %v2515 = vrot.slane %v2514, 1
        %v2516 = vmax.f32 %v2514, %v2515
        %v2517 = vsel %vm1928, %v1693, -inf
        %v2518 = vrot.slane %v2517, 4
        %v2519 = vmax.f32 %v2517, %v2518
        %v2520 = vrot.slane %v2519, 2
        %v2521 = vmax.f32 %v2519, %v2520
        %v2522 = vrot.slane %v2521, 1
        %v2523 = vmax.f32 %v2521, %v2522
        %v2524 = vsel %vm1928, %v1799, -inf
        %v2525 = vrot.slane %v2524, 4
        %v2526 = vmax.f32 %v2524, %v2525
        %v2527 = vrot.slane %v2526, 2
        %v2528 = vmax.f32 %v2526, %v2527
        %v2529 = vrot.slane %v2528, 1
        %v2530 = vmax.f32 %v2528, %v2529
        %v2531 = vsel %vm1928, %v1800, -inf
        %v2532 = vrot.slane %v2531, 4
        %v2533 = vmax.f32 %v2531, %v2532
        %v2534 = vrot.slane %v2533, 2
        %v2535 = vmax.f32 %v2533, %v2534
        %v2536 = vrot.slane %v2535, 1
        %v2537 = vmax.f32 %v2535, %v2536
        %v2538 = vsel %vm1928, %v1801, -inf
        %v2539 = vrot.slane %v2538, 4
        %v2540 = vmax.f32 %v2538, %v2539
        %v2541 = vrot.slane %v2540, 2
        %v2542 = vmax.f32 %v2540, %v2541
        %v2543 = vrot.slane %v2542, 1
        %v2544 = vmax.f32 %v2542, %v2543
        %v2545 = vsel %vm1928, %v1694, -inf
        %v2546 = vrot.slane %v2545, 4
        %v2547 = vmax.f32 %v2545, %v2546
        %v2548 = vrot.slane %v2547, 2
        %v2549 = vmax.f32 %v2547, %v2548
        %v2550 = vrot.slane %v2549, 1
        %v2551 = vmax.f32 %v2549, %v2550
        %v2552 = vsel %vm1928, %v1802, -inf
        %v2553 = vrot.slane %v2552, 4
        %v2554 = vmax.f32 %v2552, %v2553
        %v2555 = vrot.slane %v2554, 2
        %v2556 = vmax.f32 %v2554, %v2555
        %v2557 = vrot.slane %v2556, 1
        %v2558 = vmax.f32 %v2556, %v2557
        %v2559 = vsel %vm1928, %v1803, -inf
        %v2560 = vrot.slane %v2559, 4
        %v2561 = vmax.f32 %v2559, %v2560
        %v2562 = vrot.slane %v2561, 2
        %v2563 = vmax.f32 %v2561, %v2562
        %v2564 = vrot.slane %v2563, 1
        %v2565 = vmax.f32 %v2563, %v2564
        %v2566 = vsel %vm1928, %v1804, -inf
        %v2567 = vrot.slane %v2566, 4
        %v2568 = vmax.f32 %v2566, %v2567
        %v2569 = vrot.slane %v2568, 2
        %v2570 = vmax.f32 %v2568, %v2569
        %v2571 = vrot.slane %v2570, 1
        %v2572 = vmax.f32 %v2570, %v2571
        %v2573 = vsel %vm1928, %v1695, -inf
        %v2574 = vrot.slane %v2573, 4
        %v2575 = vmax.f32 %v2573, %v2574
        %v2576 = vrot.slane %v2575, 2
        %v2577 = vmax.f32 %v2575, %v2576
        %v2578 = vrot.slane %v2577, 1
        %v2579 = vmax.f32 %v2577, %v2578
        %v2580 = vsel %vm1928, %v1805, -inf
        %v2581 = vrot.slane %v2580, 4
        %v2582 = vmax.f32 %v2580, %v2581
        %v2583 = vrot.slane %v2582, 2
        %v2584 = vmax.f32 %v2582, %v2583
        %v2585 = vrot.slane %v2584, 1
        %v2586 = vmax.f32 %v2584, %v2585
        %v2587 = vsel %vm1928, %v1806, -inf
        %v2588 = vrot.slane %v2587, 4
        %v2589 = vmax.f32 %v2587, %v2588
        %v2590 = vrot.slane %v2589, 2
        %v2591 = vmax.f32 %v2589, %v2590
        %v2592 = vrot.slane %v2591, 1
        %v2593 = vmax.f32 %v2591, %v2592
        %v2594 = vsel %vm1928, %v1807, -inf
        %v2595 = vrot.slane %v2594, 4
        %v2596 = vmax.f32 %v2594, %v2595
        %v2597 = vrot.slane %v2596, 2
        %v2598 = vmax.f32 %v2596, %v2597
        %v2599 = vrot.slane %v2598, 1
        %v2600 = vmax.f32 %v2598, %v2599
        %v2601 = vsel %vm1928, %v1696, -inf
        %v2602 = vrot.slane %v2601, 4
        %v2603 = vmax.f32 %v2601, %v2602
        %v2604 = vrot.slane %v2603, 2
        %v2605 = vmax.f32 %v2603, %v2604
        %v2606 = vrot.slane %v2605, 1
        %v2607 = vmax.f32 %v2605, %v2606
        %v2608 = vsel %vm1928, %v1808, -inf
        %v2609 = vrot.slane %v2608, 4
        %v2610 = vmax.f32 %v2608, %v2609
        %v2611 = vrot.slane %v2610, 2
        %v2612 = vmax.f32 %v2610, %v2611
        %v2613 = vrot.slane %v2612, 1
        %v2614 = vmax.f32 %v2612, %v2613
        %v2615 = vsel %vm1928, %v1809, -inf
        %v2616 = vrot.slane %v2615, 4
        %v2617 = vmax.f32 %v2615, %v2616
        %v2618 = vrot.slane %v2617, 2
        %v2619 = vmax.f32 %v2617, %v2618
        %v2620 = vrot.slane %v2619, 1
        %v2621 = vmax.f32 %v2619, %v2620
        %v2622 = vsel %vm1928, %v1810, -inf
        %v2623 = vrot.slane %v2622, 4
        %v2624 = vmax.f32 %v2622, %v2623
        %v2625 = vrot.slane %v2624, 2
        %v2626 = vmax.f32 %v2624, %v2625
        %v2627 = vrot.slane %v2626, 1
        %v2628 = vmax.f32 %v2626, %v2627
        %v2629 = vsel %vm1928, %v1697, -inf
        %v2630 = vrot.slane %v2629, 4
        %v2631 = vmax.f32 %v2629, %v2630
        %v2632 = vrot.slane %v2631, 2
        %v2633 = vmax.f32 %v2631, %v2632
        %v2634 = vrot.slane %v2633, 1
        %v2635 = vmax.f32 %v2633, %v2634
        %v2636 = vsel %vm1928, %v1811, -inf
        %v2637 = vrot.slane %v2636, 4
        %v2638 = vmax.f32 %v2636, %v2637
        %v2639 = vrot.slane %v2638, 2
        %v2640 = vmax.f32 %v2638, %v2639
        %v2641 = vrot.slane %v2640, 1
        %v2642 = vmax.f32 %v2640, %v2641
        %v2643 = vsel %vm1928, %v1812, -inf
        %v2644 = vrot.slane %v2643, 4
        %v2645 = vmax.f32 %v2643, %v2644
        %v2646 = vrot.slane %v2645, 2
        %v2647 = vmax.f32 %v2645, %v2646
        %v2648 = vrot.slane %v2647, 1
        %v2649 = vmax.f32 %v2647, %v2648
        %v2650 = vsel %vm1928, %v1813, -inf
        %v2651 = vrot.slane %v2650, 4
        %v2652 = vmax.f32 %v2650, %v2651
        %v2653 = vrot.slane %v2652, 2
        %v2654 = vmax.f32 %v2652, %v2653
        %v2655 = vrot.slane %v2654, 1
        %v2656 = vmax.f32 %v2654, %v2655
        %v2657 = vsel %vm1928, %v1698, -inf
        %v2658 = vrot.slane %v2657, 4
        %v2659 = vmax.f32 %v2657, %v2658
        %v2660 = vrot.slane %v2659, 2
        %v2661 = vmax.f32 %v2659, %v2660
        %v2662 = vrot.slane %v2661, 1
        %v2663 = vmax.f32 %v2661, %v2662
        %v2664 = vsel %vm1928, %v1814, -inf
        %v2665 = vrot.slane %v2664, 4
        %v2666 = vmax.f32 %v2664, %v2665
        %v2667 = vrot.slane %v2666, 2
        %v2668 = vmax.f32 %v2666, %v2667
        %v2669 = vrot.slane %v2668, 1
        %v2670 = vmax.f32 %v2668, %v2669
        %v2671 = vsel %vm1928, %v1815, -inf
        %v2672 = vrot.slane %v2671, 4
        %v2673 = vmax.f32 %v2671, %v2672
        %v2674 = vrot.slane %v2673, 2
        %v2675 = vmax.f32 %v2673, %v2674
        %v2676 = vrot.slane %v2675, 1
        %v2677 = vmax.f32 %v2675, %v2676
        %v2678 = vsel %vm1928, %v1816, -inf
        %v2679 = vrot.slane %v2678, 4
        %v2680 = vmax.f32 %v2678, %v2679
        %v2681 = vrot.slane %v2680, 2
        %v2682 = vmax.f32 %v2680, %v2681
        %v2683 = vrot.slane %v2682, 1
        %v2684 = vmax.f32 %v2682, %v2683
        %v2685 = vsel %vm1928, %v1699, -inf
        %v2686 = vrot.slane %v2685, 4
        %v2687 = vmax.f32 %v2685, %v2686
        %v2688 = vrot.slane %v2687, 2
        %v2689 = vmax.f32 %v2687, %v2688
        %v2690 = vrot.slane %v2689, 1
        %v2691 = vmax.f32 %v2689, %v2690
        %v2692 = vsel %vm1928, %v1817, -inf
        %v2693 = vrot.slane %v2692, 4
        %v2694 = vmax.f32 %v2692, %v2693
        %v2695 = vrot.slane %v2694, 2
        %v2696 = vmax.f32 %v2694, %v2695
        %v2697 = vrot.slane %v2696, 1
        %v2698 = vmax.f32 %v2696, %v2697
        %v2699 = vsel %vm1928, %v1818, -inf
        %v2700 = vrot.slane %v2699, 4
        %v2701 = vmax.f32 %v2699, %v2700
        %v2702 = vrot.slane %v2701, 2
        %v2703 = vmax.f32 %v2701, %v2702
        %v2704 = vrot.slane %v2703, 1
        %v2705 = vmax.f32 %v2703, %v2704
        %v2706 = vsel %vm1928, %v1819, -inf
        %v2707 = vrot.slane %v2706, 4
        %v2708 = vmax.f32 %v2706, %v2707
        %v2709 = vrot.slane %v2708, 2
        %v2710 = vmax.f32 %v2708, %v2709
        %v2711 = vrot.slane %v2710, 1
        %v2712 = vmax.f32 %v2710, %v2711
        %v2713 = vsel %vm1928, %v1700, -inf
        %v2714 = vrot.slane %v2713, 4
        %v2715 = vmax.f32 %v2713, %v2714
        %v2716 = vrot.slane %v2715, 2
        %v2717 = vmax.f32 %v2715, %v2716
        %v2718 = vrot.slane %v2717, 1
        %v2719 = vmax.f32 %v2717, %v2718
        %v2720 = vsel %vm1928, %v1820, -inf
        %v2721 = vrot.slane %v2720, 4
        %v2722 = vmax.f32 %v2720, %v2721
        %v2723 = vrot.slane %v2722, 2
        %v2724 = vmax.f32 %v2722, %v2723
        %v2725 = vrot.slane %v2724, 1
        %v2726 = vmax.f32 %v2724, %v2725
        %v2727 = vsel %vm1928, %v1821, -inf
        %v2728 = vrot.slane %v2727, 4
        %v2729 = vmax.f32 %v2727, %v2728
        %v2730 = vrot.slane %v2729, 2
        %v2731 = vmax.f32 %v2729, %v2730
        %v2732 = vrot.slane %v2731, 1
        %v2733 = vmax.f32 %v2731, %v2732
        %v2734 = vsel %vm1928, %v1822, -inf
        %v2735 = vrot.slane %v2734, 4
        %v2736 = vmax.f32 %v2734, %v2735
        %v2737 = vrot.slane %v2736, 2
        %v2738 = vmax.f32 %v2736, %v2737
        %v2739 = vrot.slane %v2738, 1
        %v2740 = vmax.f32 %v2738, %v2739
        %v2741 = vsel %vm1928, %v1701, -inf
        %v2742 = vrot.slane %v2741, 4
        %v2743 = vmax.f32 %v2741, %v2742
        %v2744 = vrot.slane %v2743, 2
        %v2745 = vmax.f32 %v2743, %v2744
        %v2746 = vrot.slane %v2745, 1
        %v2747 = vmax.f32 %v2745, %v2746
        %v2748 = vsel %vm1928, %v1823, -inf
        %v2749 = vrot.slane %v2748, 4
        %v2750 = vmax.f32 %v2748, %v2749
        %v2751 = vrot.slane %v2750, 2
        %v2752 = vmax.f32 %v2750, %v2751
        %v2753 = vrot.slane %v2752, 1
        %v2754 = vmax.f32 %v2752, %v2753
        %v2755 = vsel %vm1928, %v1824, -inf
        %v2756 = vrot.slane %v2755, 4
        %v2757 = vmax.f32 %v2755, %v2756
        %v2758 = vrot.slane %v2757, 2
        %v2759 = vmax.f32 %v2757, %v2758
        %v2760 = vrot.slane %v2759, 1
        %v2761 = vmax.f32 %v2759, %v2760
        %v2762 = vsel %vm1928, %v1825, -inf
        %v2763 = vrot.slane %v2762, 4
        %v2764 = vmax.f32 %v2762, %v2763
        %v2765 = vrot.slane %v2764, 2
        %v2766 = vmax.f32 %v2764, %v2765
        %v2767 = vrot.slane %v2766, 1
        %v2768 = vmax.f32 %v2766, %v2767
        %v2769 = vsel %vm1928, %v1702, -inf
        %v2770 = vrot.slane %v2769, 4
        %v2771 = vmax.f32 %v2769, %v2770
        %v2772 = vrot.slane %v2771, 2
        %v2773 = vmax.f32 %v2771, %v2772
        %v2774 = vrot.slane %v2773, 1
        %v2775 = vmax.f32 %v2773, %v2774
        %v2776 = vsel %vm1928, %v1826, -inf
        %v2777 = vrot.slane %v2776, 4
        %v2778 = vmax.f32 %v2776, %v2777
        %v2779 = vrot.slane %v2778, 2
        %v2780 = vmax.f32 %v2778, %v2779
        %v2781 = vrot.slane %v2780, 1
        %v2782 = vmax.f32 %v2780, %v2781
        %v2783 = vsel %vm1928, %v1827, -inf
        %v2784 = vrot.slane %v2783, 4
        %v2785 = vmax.f32 %v2783, %v2784
        %v2786 = vrot.slane %v2785, 2
        %v2787 = vmax.f32 %v2785, %v2786
        %v2788 = vrot.slane %v2787, 1
        %v2789 = vmax.f32 %v2787, %v2788
        %v2790 = vsel %vm1928, %v1828, -inf
        %v2791 = vrot.slane %v2790, 4
        %v2792 = vmax.f32 %v2790, %v2791
        %v2793 = vrot.slane %v2792, 2
        %v2794 = vmax.f32 %v2792, %v2793
        %v2795 = vrot.slane %v2794, 1
        %v2796 = vmax.f32 %v2794, %v2795
        %v2797 = vsel %vm1928, %v1703, -inf
        %v2798 = vrot.slane %v2797, 4
        %v2799 = vmax.f32 %v2797, %v2798
        %v2800 = vrot.slane %v2799, 2
        %v2801 = vmax.f32 %v2799, %v2800
        %v2802 = vrot.slane %v2801, 1
        %v2803 = vmax.f32 %v2801, %v2802
        %v2804 = vsel %vm1928, %v1829, -inf
        %v2805 = vrot.slane %v2804, 4
        %v2806 = vmax.f32 %v2804, %v2805
        %v2807 = vrot.slane %v2806, 2
        %v2808 = vmax.f32 %v2806, %v2807
        %v2809 = vrot.slane %v2808, 1
        %v2810 = vmax.f32 %v2808, %v2809
        %v2811 = vsel %vm1928, %v1830, -inf
        %v2812 = vrot.slane %v2811, 4
        %v2813 = vmax.f32 %v2811, %v2812
        %v2814 = vrot.slane %v2813, 2
        %v2815 = vmax.f32 %v2813, %v2814
        %v2816 = vrot.slane %v2815, 1
        %v2817 = vmax.f32 %v2815, %v2816
        %v2818 = vsel %vm1928, %v1831, -inf
        %v2819 = vrot.slane %v2818, 4
        %v2820 = vmax.f32 %v2818, %v2819
        %v2821 = vrot.slane %v2820, 2
        %v2822 = vmax.f32 %v2820, %v2821
        %v2823 = vrot.slane %v2822, 1
        %v2824 = vmax.f32 %v2822, %v2823
        %v2825 = vmax.f32 %v1935, %v1991
        %v2826 = vmax.f32 %v1942, %v1998
        %v2827 = vmax.f32 %v1949, %v2005
        %v2828 = vmax.f32 %v1956, %v2012
        %v2829 = vmax.f32 %v1963, %v2019
        %v2830 = vmax.f32 %v1970, %v2026
        %v2831 = vmax.f32 %v1977, %v2033
        %v2832 = vmax.f32 %v1984, %v2040
        %v2833 = vmax.f32 %v2047, %v2103
        %v2834 = vmax.f32 %v2054, %v2110
        %v2835 = vmax.f32 %v2061, %v2117
        %v2836 = vmax.f32 %v2068, %v2124
        %v2837 = vmax.f32 %v2075, %v2131
        %v2838 = vmax.f32 %v2082, %v2138
        %v2839 = vmax.f32 %v2089, %v2145
        %v2840 = vmax.f32 %v2096, %v2152
        %v2841 = vmax.f32 %v2159, %v2215
        %v2842 = vmax.f32 %v2166, %v2222
        %v2843 = vmax.f32 %v2173, %v2229
        %v2844 = vmax.f32 %v2180, %v2236
        %v2845 = vmax.f32 %v2187, %v2243
        %v2846 = vmax.f32 %v2194, %v2250
        %v2847 = vmax.f32 %v2201, %v2257
        %v2848 = vmax.f32 %v2208, %v2264
        %v2849 = vmax.f32 %v2271, %v2327
        %v2850 = vmax.f32 %v2278, %v2334
        %v2851 = vmax.f32 %v2285, %v2341
        %v2852 = vmax.f32 %v2292, %v2348
        %v2853 = vmax.f32 %v2299, %v2355
        %v2854 = vmax.f32 %v2306, %v2362
        %v2855 = vmax.f32 %v2313, %v2369
        %v2856 = vmax.f32 %v2320, %v2376
        %v2857 = vmax.f32 %v2383, %v2439
        %v2858 = vmax.f32 %v2390, %v2446
        %v2859 = vmax.f32 %v2397, %v2453
        %v2860 = vmax.f32 %v2404, %v2460
        %v2861 = vmax.f32 %v2411, %v2467
        %v2862 = vmax.f32 %v2418, %v2474
        %v2863 = vmax.f32 %v2425, %v2481
        %v2864 = vmax.f32 %v2432, %v2488
        %v2865 = vmax.f32 %v2495, %v2551
        %v2866 = vmax.f32 %v2502, %v2558
        %v2867 = vmax.f32 %v2509, %v2565
        %v2868 = vmax.f32 %v2516, %v2572
        %v2869 = vmax.f32 %v2523, %v2579
        %v2870 = vmax.f32 %v2530, %v2586
        %v2871 = vmax.f32 %v2537, %v2593
        %v2872 = vmax.f32 %v2544, %v2600
        %v2873 = vmax.f32 %v2607, %v2663
        %v2874 = vmax.f32 %v2614, %v2670
        %v2875 = vmax.f32 %v2621, %v2677
        %v2876 = vmax.f32 %v2628, %v2684
        %v2877 = vmax.f32 %v2635, %v2691
        %v2878 = vmax.f32 %v2642, %v2698
        %v2879 = vmax.f32 %v2649, %v2705
        %v2880 = vmax.f32 %v2656, %v2712
        %v2881 = vmax.f32 %v2719, %v2775
        %v2882 = vmax.f32 %v2726, %v2782
        %v2883 = vmax.f32 %v2733, %v2789
        %v2884 = vmax.f32 %v2740, %v2796
        %v2885 = vmax.f32 %v2747, %v2803
        %v2886 = vmax.f32 %v2754, %v2810
        %v2887 = vmax.f32 %v2761, %v2817
        %v2888 = vmax.f32 %v2768, %v2824
        %v2889 = vpack.c.bf16 %v2825, %v2825
        %v2890 = vpack.c.bf16 %v2826, %v2826
        %v2891 = vpack.c.bf16 %v2827, %v2827
        %v2892 = vpack.c.bf16 %v2828, %v2828
        %v2893 = vpack.c.bf16 %v2829, %v2829
        %v2894 = vpack.c.bf16 %v2830, %v2830
        %v2895 = vpack.c.bf16 %v2831, %v2831
        %v2896 = vpack.c.bf16 %v2832, %v2832
        %v2897 = vpack.c.bf16 %v2833, %v2833
        %v2898 = vpack.c.bf16 %v2834, %v2834
        %v2899 = vpack.c.bf16 %v2835, %v2835
        %v2900 = vpack.c.bf16 %v2836, %v2836
        %v2901 = vpack.c.bf16 %v2837, %v2837
        %v2902 = vpack.c.bf16 %v2838, %v2838
        %v2903 = vpack.c.bf16 %v2839, %v2839
        %v2904 = vpack.c.bf16 %v2840, %v2840
        %v2905 = vpack.c.bf16 %v2841, %v2841
        %v2906 = vpack.c.bf16 %v2842, %v2842
        %v2907 = vpack.c.bf16 %v2843, %v2843
        %v2908 = vpack.c.bf16 %v2844, %v2844
        %v2909 = vpack.c.bf16 %v2845, %v2845
        %v2910 = vpack.c.bf16 %v2846, %v2846
        %v2911 = vpack.c.bf16 %v2847, %v2847
        %v2912 = vpack.c.bf16 %v2848, %v2848
        %v2913 = vpack.c.bf16 %v2849, %v2849
        %v2914 = vpack.c.bf16 %v2850, %v2850
        %v2915 = vpack.c.bf16 %v2851, %v2851
        %v2916 = vpack.c.bf16 %v2852, %v2852
        %v2917 = vpack.c.bf16 %v2853, %v2853
        %v2918 = vpack.c.bf16 %v2854, %v2854
        %v2919 = vpack.c.bf16 %v2855, %v2855
        %v2920 = vpack.c.bf16 %v2856, %v2856
        %v2921 = vpack.c.bf16 %v2857, %v2857
        %v2922 = vpack.c.bf16 %v2858, %v2858
        %v2923 = vpack.c.bf16 %v2859, %v2859
        %v2924 = vpack.c.bf16 %v2860, %v2860
        %v2925 = vpack.c.bf16 %v2861, %v2861
        %v2926 = vpack.c.bf16 %v2862, %v2862
        %v2927 = vpack.c.bf16 %v2863, %v2863
        %v2928 = vpack.c.bf16 %v2864, %v2864
        %v2929 = vpack.c.bf16 %v2865, %v2865
        %v2930 = vpack.c.bf16 %v2866, %v2866
        %v2931 = vpack.c.bf16 %v2867, %v2867
        %v2932 = vpack.c.bf16 %v2868, %v2868
        %v2933 = vpack.c.bf16 %v2869, %v2869
        %v2934 = vpack.c.bf16 %v2870, %v2870
        %v2935 = vpack.c.bf16 %v2871, %v2871
        %v2936 = vpack.c.bf16 %v2872, %v2872
        %v2937 = vpack.c.bf16 %v2873, %v2873
        %v2938 = vpack.c.bf16 %v2874, %v2874
        %v2939 = vpack.c.bf16 %v2875, %v2875
        %v2940 = vpack.c.bf16 %v2876, %v2876
        %v2941 = vpack.c.bf16 %v2877, %v2877
        %v2942 = vpack.c.bf16 %v2878, %v2878
        %v2943 = vpack.c.bf16 %v2879, %v2879
        %v2944 = vpack.c.bf16 %v2880, %v2880
        %v2945 = vpack.c.bf16 %v2881, %v2881
        %v2946 = vpack.c.bf16 %v2882, %v2882
        %v2947 = vpack.c.bf16 %v2883, %v2883
        %v2948 = vpack.c.bf16 %v2884, %v2884
        %v2949 = vpack.c.bf16 %v2885, %v2885
        %v2950 = vpack.c.bf16 %v2886, %v2886
        %v2951 = vpack.c.bf16 %v2887, %v2887
        %v2952 = vpack.c.bf16 %v2888, %v2888
        %v3017 = vunpack.c.l.b16 %v2889
        %v3018 = vunpack.c.l.b16 %v2890
        %v3019 = vunpack.c.l.b16 %v2891
        %v3020 = vunpack.c.l.b16 %v2892
        %v3021 = vunpack.c.l.b16 %v2893
        %v3022 = vunpack.c.l.b16 %v2894
        %v3023 = vunpack.c.l.b16 %v2895
        %v3024 = vunpack.c.l.b16 %v2896
        %v3025 = vunpack.c.l.b16 %v2897
        %v3026 = vunpack.c.l.b16 %v2898
        %v3027 = vunpack.c.l.b16 %v2899
        %v3028 = vunpack.c.l.b16 %v2900
        %v3029 = vunpack.c.l.b16 %v2901
        %v3030 = vunpack.c.l.b16 %v2902
        %v3031 = vunpack.c.l.b16 %v2903
        %v3032 = vunpack.c.l.b16 %v2904
        %v3033 = vunpack.c.l.b16 %v2905
        %v3034 = vunpack.c.l.b16 %v2906
        %v3035 = vunpack.c.l.b16 %v2907
        %v3036 = vunpack.c.l.b16 %v2908
        %v3037 = vunpack.c.l.b16 %v2909
        %v3038 = vunpack.c.l.b16 %v2910
        %v3039 = vunpack.c.l.b16 %v2911
        %v3040 = vunpack.c.l.b16 %v2912
        %v3041 = vunpack.c.l.b16 %v2913
        %v3042 = vunpack.c.l.b16 %v2914
        %v3043 = vunpack.c.l.b16 %v2915
        %v3044 = vunpack.c.l.b16 %v2916
        %v3045 = vunpack.c.l.b16 %v2917
        %v3046 = vunpack.c.l.b16 %v2918
        %v3047 = vunpack.c.l.b16 %v2919
        %v3048 = vunpack.c.l.b16 %v2920
        %v3049 = vunpack.c.l.b16 %v2921
        %v3050 = vunpack.c.l.b16 %v2922
        %v3051 = vunpack.c.l.b16 %v2923
        %v3052 = vunpack.c.l.b16 %v2924
        %v3053 = vunpack.c.l.b16 %v2925
        %v3054 = vunpack.c.l.b16 %v2926
        %v3055 = vunpack.c.l.b16 %v2927
        %v3056 = vunpack.c.l.b16 %v2928
        %v3057 = vunpack.c.l.b16 %v2929
        %v3058 = vunpack.c.l.b16 %v2930
        %v3059 = vunpack.c.l.b16 %v2931
        %v3060 = vunpack.c.l.b16 %v2932
        %v3061 = vunpack.c.l.b16 %v2933
        %v3062 = vunpack.c.l.b16 %v2934
        %v3063 = vunpack.c.l.b16 %v2935
        %v3064 = vunpack.c.l.b16 %v2936
        %v3065 = vunpack.c.l.b16 %v2937
        %v3066 = vunpack.c.l.b16 %v2938
        %v3067 = vunpack.c.l.b16 %v2939
        %v3068 = vunpack.c.l.b16 %v2940
        %v3069 = vunpack.c.l.b16 %v2941
        %v3070 = vunpack.c.l.b16 %v2942
        %v3071 = vunpack.c.l.b16 %v2943
        %v3072 = vunpack.c.l.b16 %v2944
        %v3073 = vunpack.c.l.b16 %v2945
        %v3074 = vunpack.c.l.b16 %v2946
        %v3075 = vunpack.c.l.b16 %v2947
        %v3076 = vunpack.c.l.b16 %v2948
        %v3077 = vunpack.c.l.b16 %v2949
        %v3078 = vunpack.c.l.b16 %v2950
        %v3079 = vunpack.c.l.b16 %v2951
        %v3080 = vunpack.c.l.b16 %v2952
        %vm3081 = vcmask 1041409
        %v3082 = vsel %vm3081, %v3018, %v3017
        %vm3083 = vcmask 1042434
        %v3084 = vsel %vm3083, %v3019, %v3082
        %vm3085 = vcmask 1043459
        %v3086 = vsel %vm3085, %v3020, %v3084
        %vm3087 = vcmask 1044484
        %v3088 = vsel %vm3087, %v3021, %v3086
        %vm3089 = vcmask 1045509
        %v3090 = vsel %vm3089, %v3022, %v3088
        %vm3091 = vcmask 1046534
        %v3092 = vsel %vm3091, %v3023, %v3090
        %vm3093 = vcmask 1047559
        %v3094 = vsel %vm3093, %v3024, %v3092
        %v3095 = vsel %vm3081, %v3026, %v3025
        %v3096 = vsel %vm3083, %v3027, %v3095
        %v3097 = vsel %vm3085, %v3028, %v3096
        %v3098 = vsel %vm3087, %v3029, %v3097
        %v3099 = vsel %vm3089, %v3030, %v3098
        %v3100 = vsel %vm3091, %v3031, %v3099
        %v3101 = vsel %vm3093, %v3032, %v3100
        %v3102 = vsel %vm3081, %v3034, %v3033
        %v3103 = vsel %vm3083, %v3035, %v3102
        %v3104 = vsel %vm3085, %v3036, %v3103
        %v3105 = vsel %vm3087, %v3037, %v3104
        %v3106 = vsel %vm3089, %v3038, %v3105
        %v3107 = vsel %vm3091, %v3039, %v3106
        %v3108 = vsel %vm3093, %v3040, %v3107
        %v3109 = vsel %vm3081, %v3042, %v3041
        %v3110 = vsel %vm3083, %v3043, %v3109
        %v3111 = vsel %vm3085, %v3044, %v3110
        %v3112 = vsel %vm3087, %v3045, %v3111
        %v3113 = vsel %vm3089, %v3046, %v3112
        %v3114 = vsel %vm3091, %v3047, %v3113
        %v3115 = vsel %vm3093, %v3048, %v3114
        %v3116 = vsel %vm3081, %v3050, %v3049
        %v3117 = vsel %vm3083, %v3051, %v3116
        %v3118 = vsel %vm3085, %v3052, %v3117
        %v3119 = vsel %vm3087, %v3053, %v3118
        %v3120 = vsel %vm3089, %v3054, %v3119
        %v3121 = vsel %vm3091, %v3055, %v3120
        %v3122 = vsel %vm3093, %v3056, %v3121
        %v3123 = vsel %vm3081, %v3058, %v3057
        %v3124 = vsel %vm3083, %v3059, %v3123
        %v3125 = vsel %vm3085, %v3060, %v3124
        %v3126 = vsel %vm3087, %v3061, %v3125
        %v3127 = vsel %vm3089, %v3062, %v3126
        %v3128 = vsel %vm3091, %v3063, %v3127
        %v3129 = vsel %vm3093, %v3064, %v3128
        %v3130 = vsel %vm3081, %v3066, %v3065
        %v3131 = vsel %vm3083, %v3067, %v3130
        %v3132 = vsel %vm3085, %v3068, %v3131
        %v3133 = vsel %vm3087, %v3069, %v3132
        %v3134 = vsel %vm3089, %v3070, %v3133
        %v3135 = vsel %vm3091, %v3071, %v3134
        %v3136 = vsel %vm3093, %v3072, %v3135
        %v3137 = vsel %vm3081, %v3074, %v3073
        %v3138 = vsel %vm3083, %v3075, %v3137
        %v3139 = vsel %vm3085, %v3076, %v3138
        %v3140 = vsel %vm3087, %v3077, %v3139
        %v3141 = vsel %vm3089, %v3078, %v3140
        %v3142 = vsel %vm3091, %v3079, %v3141
        %v3143 = vsel %vm3093, %v3080, %v3142
        %v3144 = vpack.c.b16 %v3094, %v3094
        %v3145 = vpack.c.b16 %v3101, %v3101
        %v3146 = vpack.c.b16 %v3108, %v3108
        %v3147 = vpack.c.b16 %v3115, %v3115
        %v3148 = vpack.c.b16 %v3122, %v3122
        %v3149 = vpack.c.b16 %v3129, %v3129
        %v3150 = vpack.c.b16 %v3136, %v3136
        %v3151 = vpack.c.b16 %v3143, %v3143
        %3160 = vst [vmem:[%s231] sm:$0xf] %v3144
        %3161 = vst [vmem:[%s231 + $0x4] sm:$0xf] %v3145
        %3162 = vst [vmem:[%s231 + $0x8] sm:$0xf] %v3146
        %3163 = vst [vmem:[%s231 + $0xc] sm:$0xf] %v3147
        %3164 = vst [vmem:[%s231 + $0x10] sm:$0xf] %v3148
        %3165 = vst [vmem:[%s231 + $0x14] sm:$0xf] %v3149
        %3166 = vst [vmem:[%s231 + $0x18] sm:$0xf] %v3150
        %3167 = vst [vmem:[%s231 + $0x1c] sm:$0xf] %v3151
        %s3168 = sand.u32 %s131, 1
        %s3169 = scalar_lea.sflag [#allocation4], %s3168
        %s3170 = sand.u32 %s131, 1
        %s3171 = smul.addr %s3170, 32
        %s3172 = scalar_lea.vmem [#allocation7], %s3171
        // Predicated region
        $region45: #{tpu_custom_call.1} parent=35 // pred_check
          %p3173 = pneg %p141
        $region46: #{tpu_custom_call.1} parent=35 // pred_check_branch
          %3175 = sbr.rel (%p3173) target = $region48
        $region47: #{tpu_custom_call.1} parent=35 // pred_region
          %s3176 = smul.u32 8, %s25
          %3178 = vsyncadd %s3169, 0
          %s3179 = smul.addr %s24, 8
          %s3180 = sadd.s32 %s3176, %s3179
          %s3181 = smul.addr %s3180, 4
          %s3182 = scalar_lea.hbm %s4, %s3181
          %s3183 = sshll.u32 %s3172, 4
          %s3184 = int_to_ptr.vmem [resolvable:$true] %s3183
          %s3185 = sshll.u32 %s3182, 4
          %s3186 = int_to_ptr.hbm [resolvable:$true] %s3185
          %3191 = dma.vmem_to_hbm [thread:$0]  %s3184, 512, %s3186, %s3169, 64, 64, 4
        $region48: #{tpu_custom_call.1} parent=35 // pred_fallthru
          _
      $region36: #{tpu_custom_call.1} parent=5 // pred_fallthru
        _
      %p3192 = scmp.le.s32.totalorder 2, %s15
      // Predicated region
      $region49: #{tpu_custom_call.1} parent=5 // pred_check
        %p3193 = pneg %p3192
      $region50: #{tpu_custom_call.1} parent=5 // pred_check_branch
        %3195 = sbr.rel (%p3193) target = $region52
      $region51: #{tpu_custom_call.1} parent=5 // pred_region
        %s3196 = ssub.s32 %s15, 2
        // Predicated region
        $region53: #{tpu_custom_call.1} parent=51 // pred_check
          %p3197 = pneg %p147
        $region54: #{tpu_custom_call.1} parent=51 // pred_check_branch
          %3199 = sbr.rel (%p3197) target = $region56
        $region55: #{tpu_custom_call.1} parent=51 // pred_region
          %s3200 = sand.u32 %s132, 1
          %s3201 = scalar_lea.sflag [#allocation4], %s3200
          %s3202 = sand.u32 %s132, 1
          %s3203 = smul.addr %s3202, 32
          %s3204 = scalar_lea.vmem [#allocation7], %s3203
          %3206 = dma.done %s3201, 512
        $region56: #{tpu_custom_call.1} parent=51 // pred_fallthru
          _
      $region52: #{tpu_custom_call.1} parent=5 // pred_fallthru
        _
    $region6: #{tpu_custom_call.1} parent=1 // loop_footer
      %s19 = sadd.s32 1, %s15
    $region7: #{tpu_custom_call.1} parent=1 // loop_footer_branch
      %14 = sbr.rel target = $region3
    $region8: #{tpu_custom_call.1} parent=1 // loop_exit
      _
    %3207 = vsyncpa [#allocation3], 1
    %s3208 = scalar_lea.sflag [#allocation3], 1
    %3209 = vsyncpa %s3208, 1
    %3210 = vsyncpa [#allocation6], 1
    %3211 = vsyncpa [#allocation4], 1
    %s3212 = scalar_lea.sflag [#allocation4], 1
    %3213 = vsyncpa %s3212, 1

</llo_original>
